<compile_context>
chip_gen: v7x
topology: tpu7x:2x2x1
jax: 0.10.0
libtpu: 0.0.40
codegen_flags: <defaults>
</compile_context>

<pallas_src>
import functools

import jax
import jax.numpy as jnp
from jax.experimental import pallas as pl
from jax.experimental.pallas import tpu as pltpu


def _grad3d_kernel(x_ref, out_ref, *, penalty, inv_counts):
    """One (nc_tile, D, H, W) block -> one per-block partial scalar.

    The partial already includes the 1/count scaling for each direction, so the
    wrapper only sums the per-block partials and applies loss_weight / 3.
    """
    x = x_ref[...].astype(jnp.float32)
    inv_dy, inv_dx, inv_dz = inv_counts

    def _reduce(a, b):
        d = a - b
        if penalty == "l2":
            return jnp.sum(d * d)
        return jnp.sum(jnp.abs(d))

    # Stream the three directional reductions one at a time so only one
    # full-size temporary is live at any point (keeps VMEM pressure ~2x block).
    partial = _reduce(x[:, 1:, :, :], x[:, :-1, :, :]) * inv_dy            # along D (torch dim 2)
    partial = partial + _reduce(x[:, :, 1:, :], x[:, :, :-1, :]) * inv_dx  # along H (torch dim 3)
    partial = partial + _reduce(x[:, :, :, 1:], x[:, :, :, :-1]) * inv_dz  # along W (torch dim 4)

    # Lane-dense per-block partial: broadcast the scalar over an (8, 128) tile.
    out_ref[...] = jnp.full(out_ref.shape, partial, dtype=out_ref.dtype)


def grad3d_loss(flow, penalty="l1", loss_weight=1.0, *, nc_tile=None):
    """Pallas equivalent of Grad3dLoss.forward(flow).

    flow: (N, C, D, H, W) array (any float dtype).  Returns a scalar float32.
    """
    assert penalty in ("l1", "l2")
    N, C, D, H, W = flow.shape
    NC = N * C
    x = flow.reshape(NC, D, H, W)  # reshape only; cast to f32 happens in-kernel

    # Tile over the N*C axis.  Target ~4 MiB of f32 per block (safe on v7x's
    # smaller VMEM, and large enough to sit near the HBM roofline everywhere).
    slab_f32_bytes = D * H * W * 4
    target_block_bytes = 4 * 1024 * 1024
    if nc_tile is None:
        nc_tile = max(1, min(NC, target_block_bytes // slab_f32_bytes))
    nc_tile = int(max(1, min(NC, nc_tile)))
    while NC % nc_tile != 0:  # pick a divisor of N*C so no padding is needed
        nc_tile -= 1
    num_blocks = NC // nc_tile

    def _inv(n):
        # Empty diff (D, H or W == 1) -> NaN, matching torch.mean of an empty tensor.
        return 1.0 / float(n) if n > 0 else float("nan")

    inv_counts = (
        _inv(NC * (D - 1) * H * W),  # elements in dy (diff along D)
        _inv(NC * D * (H - 1) * W),  # elements in dx (diff along H)
        _inv(NC * D * H * (W - 1)),  # elements in dz (diff along W)
    )

    kernel = functools.partial(_grad3d_kernel, penalty=penalty, inv_counts=inv_counts)

    partials = pl.pallas_call(
        kernel,
        out_shape=jax.ShapeDtypeStruct((num_blocks, 8, 128), jnp.float32),
        grid_spec=pltpu.PrefetchScalarGridSpec(
            num_scalar_prefetch=0,
            grid=(num_blocks,),
            in_specs=[pl.BlockSpec((nc_tile, D, H, W), lambda i: (i, 0, 0, 0))],
            out_specs=pl.BlockSpec((1, 8, 128), lambda i: (i, 0, 0)),
        ),
        compiler_params=pltpu.CompilerParams(
            dimension_semantics=("parallel",),
            vmem_limit_bytes=32 * 1024 * 1024,
        ),
    )(x)

    # Tiny cross-block reduction + final scaling in the wrapper.
    return (jnp.sum(partials[:, 0, 0]) * (float(loss_weight) / 3.0)).astype(jnp.float32)


def _reference_grad3d(flow, penalty="l1", loss_weight=1.0):
    # Pure-JAX reference mirroring the PyTorch module.
    f = flow.astype(jnp.float32)
    dy = jnp.abs(f[:, :, 1:, :, :] - f[:, :, :-1, :, :])
    dx = jnp.abs(f[:, :, :, 1:, :] - f[:, :, :, :-1, :])
    dz = jnp.abs(f[:, :, :, :, 1:] - f[:, :, :, :, :-1])
    if penalty == "l2":
        dy, dx, dz = dy * dy, dx * dx, dz * dz
    d = jnp.mean(dx) + jnp.mean(dy) + jnp.mean(dz)
    return (d / 3.0) * loss_weight


if __name__ == "__main__":
    key = jax.random.PRNGKey(0)
    # Grad3dLoss operates on a 5D flow tensor (N, C, D, H, W).
    N, C, D, H, W = 2, 3, 12, 16, 16
    flow = jax.random.normal(key, (N, C, D, H, W), dtype=jnp.float32)

    ok = True
    for penalty in ("l1", "l2"):
        want = _reference_grad3d(flow, penalty=penalty, loss_weight=1.0)
        # Test both the default tiling (single block here) and a forced small
        # tile that exercises the multi-block "parallel" grid path.
        for tile in (None, 2):
            got = grad3d_loss(flow, penalty=penalty, loss_weight=1.0, nc_tile=tile)
            got = jax.block_until_ready(got)
            if not jnp.allclose(got, want, rtol=5e-5, atol=1e-6):
                ok = False
                print(f"MISMATCH penalty={penalty} nc_tile={tile}: kernel={got} ref={want}")

    if ok:
        print("KERNEL_OK")
</pallas_src>

<mosaic_0001>
module attributes {stable_mosaic.version = 11 : i64} {
  func.func @_grad3d_kernel(%arg0: i32, %arg1: memref<6x12x16x16xf32, #tpu.memory_space<vmem>>, %arg2: memref<1x8x128xf32, #tpu.memory_space<vmem>>) attributes {dimension_semantics = [#tpu.dimension_semantics<parallel>], iteration_bounds = array<i64: 1>, scalar_prefetch = 0 : i64, scratch_operands = 0 : i64, tpu.core_type = #tpu.core_type<tc>, window_params = [{transform_indices = @transform_0, window_bounds = array<i64: 6, 12, 16, 16>}, {transform_indices = @transform_1, window_bounds = array<i64: 1, 8, 128>}]} {
    %c0 = arith.constant 0 : index
    %c0_0 = arith.constant 0 : index
    %c0_1 = arith.constant 0 : index
    %c0_2 = arith.constant 0 : index
    %0 = vector.load %arg1[%c0, %c0_0, %c0_1, %c0_2] : memref<6x12x16x16xf32, #tpu.memory_space<vmem>>, vector<6x12x16x16xf32>
    %1 = vector.extract_strided_slice %0 {offsets = [0, 1, 0, 0], sizes = [6, 11, 16, 16], strides = [1, 1, 1, 1]} : vector<6x12x16x16xf32> to vector<6x11x16x16xf32>
    %2 = vector.extract_strided_slice %0 {offsets = [0, 0, 0, 0], sizes = [6, 11, 16, 16], strides = [1, 1, 1, 1]} : vector<6x12x16x16xf32> to vector<6x11x16x16xf32>
    %3 = arith.subf %1, %2 : vector<6x11x16x16xf32>
    %4 = math.absf %3 : vector<6x11x16x16xf32>
    %5 = vector.shape_cast %4 : vector<6x11x16x16xf32> to vector<1x6x11x16x16xf32>
    %cst = arith.constant dense<0.000000e+00> : vector<1xf32>
    %6 = vector.multi_reduction <add>, %5, %cst [1, 2, 3, 4] : vector<1x6x11x16x16xf32> to vector<1xf32>
    %7 = vector.shape_cast %6 : vector<1xf32> to vector<1x1x1x1x1xf32>
    %8 = vector.extract %7[0, 0, 0, 0, 0] : f32 from vector<1x1x1x1x1xf32>
    %cst_3 = arith.constant 5.91856078E-5 : f32
    %9 = arith.mulf %8, %cst_3 : f32
    %10 = vector.extract_strided_slice %0 {offsets = [0, 0, 1, 0], sizes = [6, 12, 15, 16], strides = [1, 1, 1, 1]} : vector<6x12x16x16xf32> to vector<6x12x15x16xf32>
    %11 = vector.extract_strided_slice %0 {offsets = [0, 0, 0, 0], sizes = [6, 12, 15, 16], strides = [1, 1, 1, 1]} : vector<6x12x16x16xf32> to vector<6x12x15x16xf32>
    %12 = arith.subf %10, %11 : vector<6x12x15x16xf32>
    %13 = math.absf %12 : vector<6x12x15x16xf32>
    %14 = vector.shape_cast %13 : vector<6x12x15x16xf32> to vector<1x6x12x15x16xf32>
    %cst_4 = arith.constant dense<0.000000e+00> : vector<1xf32>
    %15 = vector.multi_reduction <add>, %14, %cst_4 [1, 2, 3, 4] : vector<1x6x12x15x16xf32> to vector<1xf32>
    %16 = vector.shape_cast %15 : vector<1xf32> to vector<1x1x1x1x1xf32>
    %17 = vector.extract %16[0, 0, 0, 0, 0] : f32 from vector<1x1x1x1x1xf32>
    %cst_5 = arith.constant 5.78703693E-5 : f32
    %18 = arith.mulf %17, %cst_5 : f32
    %19 = arith.addf %9, %18 : f32
    %20 = vector.extract_strided_slice %0 {offsets = [0, 0, 0, 1], sizes = [6, 12, 16, 15], strides = [1, 1, 1, 1]} : vector<6x12x16x16xf32> to vector<6x12x16x15xf32>
    %21 = vector.extract_strided_slice %0 {offsets = [0, 0, 0, 0], sizes = [6, 12, 16, 15], strides = [1, 1, 1, 1]} : vector<6x12x16x16xf32> to vector<6x12x16x15xf32>
    %22 = arith.subf %20, %21 : vector<6x12x16x15xf32>
    %23 = math.absf %22 : vector<6x12x16x15xf32>
    %24 = vector.shape_cast %23 : vector<6x12x16x15xf32> to vector<1x6x12x16x15xf32>
    %cst_6 = arith.constant dense<0.000000e+00> : vector<1xf32>
    %25 = vector.multi_reduction <add>, %24, %cst_6 [1, 2, 3, 4] : vector<1x6x12x16x15xf32> to vector<1xf32>
    %26 = vector.shape_cast %25 : vector<1xf32> to vector<1x1x1x1x1xf32>
    %27 = vector.extract %26[0, 0, 0, 0, 0] : f32 from vector<1x1x1x1x1xf32>
    %cst_7 = arith.constant 5.78703693E-5 : f32
    %28 = arith.mulf %27, %cst_7 : f32
    %29 = arith.addf %19, %28 : f32
    %30 = vector.broadcast %29 : f32 to vector<1x8x128xf32>
    %c0_8 = arith.constant 0 : index
    %c0_9 = arith.constant 0 : index
    %c0_10 = arith.constant 0 : index
    %31 = vector.load %arg2[%c0_8, %c0_9, %c0_10] : memref<1x8x128xf32, #tpu.memory_space<vmem>>, vector<1x8x128xf32>
    tpu.vector_store %arg2[%c0_8, %c0_9, %c0_10], %30 {strides = array<i32>} : memref<1x8x128xf32, #tpu.memory_space<vmem>>, vector<1x8x128xf32>,
    return
  }
  func.func @transform_0(%arg0: i32) -> (i32, i32, i32, i32) {
    %c0_i32 = arith.constant 0 : i32
    %c0_i32_0 = arith.constant 0 : i32
    %c0_i32_1 = arith.constant 0 : i32
    %c0_i32_2 = arith.constant 0 : i32
    return %arg0, %c0_i32, %c0_i32_0, %c0_i32_1 : i32, i32, i32, i32
  }
  func.func @transform_1(%arg0: i32) -> (i32, i32, i32) {
    %c0_i32 = arith.constant 0 : i32
    %c0_i32_0 = arith.constant 0 : i32
    %c0_i32_1 = arith.constant 0 : i32
    return %arg0, %c0_i32, %c0_i32_0 : i32, i32, i32
  }
}

</mosaic_0001>

<llo_original>
// kernel: tpu_custom_call.1
$region0: #{tpu_custom_call.1}
  #allocation0 [shape = 'u32[]', space=smem, size = 0x4, offset = 0x4, fixed_abs, tag = 'smem constant byte address 0x4 - core index']
  #allocation1 [shape = 'u32[144,128]{1,0:T(1,128)}', space=vmem, size = 0x12000, scoped, tag = 'internal scratch']
  %s0 = inlined_call_operand.hbm [shape: f32[6,12,16,16], index: 0, kind: input, shape index: {}]
  %s1 = inlined_call_operand.hbm [shape: f32[1,8,128], index: 1, kind: output, shape index: {}]
  %s2 = sld [smem:[#allocation0]]
  $region18: #{tpu_custom_call.1} parent=0
    _
  %s4 = ssub.s32 1, %s2
  %s5 = scalar_select 0, %s4, %s2
  $region1: #{tpu_custom_call.1} parent=0
    #allocation2 [shape = 'u8[589824]{0}', space=vmem, size = 0x90000, scoped, tag = 'input window, operand 0, single buffered']
    #allocation3 [shape = 's32[1]{0}', space=sflag, size = 0x4, scoped, tag = 'scoped memory for tpu_custom_call.1']
    #allocation4 [shape = 's32[1]{0}', space=sflag, size = 0x4, scoped, tag = 'scoped memory for tpu_custom_call.1']
    #allocation5 [shape = 'u8[4096]{0}', space=vmem, size = 0x1000, scoped, tag = 'output window, operand 0, single buffered']
    %6 = vsyncpa [#allocation3], 0
    %7 = vsyncpa [#allocation4], 0
    // Predicated region
    $region2: #{tpu_custom_call.1} parent=1 // pred_check
      _
    $region3: #{tpu_custom_call.1} parent=1 // pred_check_branch
      %9 = sbr.rel (0) target = $region5
    $region4: #{tpu_custom_call.1} parent=1 // pred_region
      %s11 = ssub.s32 18432, 18432
      %12 = vsyncadd [#allocation3], %s11
      %s13 = sshll.u32 [#allocation2], 4
      %s14 = int_to_ptr.vmem [resolvable:$true] %s13
      %19 = dma.hbm_to_vmem [thread:$0]  %s0, 18432, %s14, [#allocation3], 128, 128, 8
    $region5: #{tpu_custom_call.1} parent=1 // pred_fallthru
      _
    // Predicated region
    $region6: #{tpu_custom_call.1} parent=1 // pred_check
      _
    $region7: #{tpu_custom_call.1} parent=1 // pred_check_branch
      %21 = sbr.rel (0) target = $region9
    $region8: #{tpu_custom_call.1} parent=1 // pred_region
      %22 = dma.done [#allocation3], 18432
    $region9: #{tpu_custom_call.1} parent=1 // pred_fallthru
      _
    %v23 = vld [vmem:[#allocation2] sm:$0xff]
    %v24 = vld [vmem:[#allocation2 + $0x8] sm:$0xff]
    %v25 = vld [vmem:[#allocation2 + $0x10] sm:$0xff]
    %v26 = vld [vmem:[#allocation2 + $0x18] sm:$0xff]
    %v27 = vld [vmem:[#allocation2 + $0x20] sm:$0xff]
    %v28 = vld [vmem:[#allocation2 + $0x28] sm:$0xff]
    %v29 = vld [vmem:[#allocation2 + $0x30] sm:$0xff]
    %v30 = vld [vmem:[#allocation2 + $0x38] sm:$0xff]
    %v31 = vld [vmem:[#allocation2 + $0x40] sm:$0xff]
    %v32 = vld [vmem:[#allocation2 + $0x48] sm:$0xff]
    %v33 = vld [vmem:[#allocation2 + $0x50] sm:$0xff]
    %v34 = vld [vmem:[#allocation2 + $0x58] sm:$0xff]
    %v35 = vld [vmem:[#allocation2 + $0x60] sm:$0xff]
    %v36 = vld [vmem:[#allocation2 + $0x68] sm:$0xff]
    %v37 = vld [vmem:[#allocation2 + $0x70] sm:$0xff]
    %v38 = vld [vmem:[#allocation2 + $0x78] sm:$0xff]
    %v39 = vld [vmem:[#allocation2 + $0x80] sm:$0xff]
    %v40 = vld [vmem:[#allocation2 + $0x88] sm:$0xff]
    %v41 = vld [vmem:[#allocation2 + $0x90] sm:$0xff]
    %v42 = vld [vmem:[#allocation2 + $0x98] sm:$0xff]
    %v43 = vld [vmem:[#allocation2 + $0xa0] sm:$0xff]
    %v44 = vld [vmem:[#allocation2 + $0xa8] sm:$0xff]
    %v45 = vld [vmem:[#allocation2 + $0xb0] sm:$0xff]
    %v46 = vld [vmem:[#allocation2 + $0xb8] sm:$0xff]
    %v47 = vld [vmem:[#allocation2 + $0xc0] sm:$0xff]
    %v48 = vld [vmem:[#allocation2 + $0xc8] sm:$0xff]
    %v49 = vld [vmem:[#allocation2 + $0xd0] sm:$0xff]
    %v50 = vld [vmem:[#allocation2 + $0xd8] sm:$0xff]
    %v51 = vld [vmem:[#allocation2 + $0xe0] sm:$0xff]
    %v52 = vld [vmem:[#allocation2 + $0xe8] sm:$0xff]
    %v53 = vld [vmem:[#allocation2 + $0xf0] sm:$0xff]
    %v54 = vld [vmem:[#allocation2 + $0xf8] sm:$0xff]
    %v55 = vld [vmem:[#allocation2 + $0x100] sm:$0xff]
    %v56 = vld [vmem:[#allocation2 + $0x108] sm:$0xff]
    %v57 = vld [vmem:[#allocation2 + $0x110] sm:$0xff]
    %v58 = vld [vmem:[#allocation2 + $0x118] sm:$0xff]
    %v59 = vld [vmem:[#allocation2 + $0x120] sm:$0xff]
    %v60 = vld [vmem:[#allocation2 + $0x128] sm:$0xff]
    %v61 = vld [vmem:[#allocation2 + $0x130] sm:$0xff]
    %v62 = vld [vmem:[#allocation2 + $0x138] sm:$0xff]
    %v63 = vld [vmem:[#allocation2 + $0x140] sm:$0xff]
    %v64 = vld [vmem:[#allocation2 + $0x148] sm:$0xff]
    %v65 = vld [vmem:[#allocation2 + $0x150] sm:$0xff]
    %v66 = vld [vmem:[#allocation2 + $0x158] sm:$0xff]
    %v67 = vld [vmem:[#allocation2 + $0x160] sm:$0xff]
    %v68 = vld [vmem:[#allocation2 + $0x168] sm:$0xff]
    %v69 = vld [vmem:[#allocation2 + $0x170] sm:$0xff]
    %v70 = vld [vmem:[#allocation2 + $0x178] sm:$0xff]
    %v71 = vld [vmem:[#allocation2 + $0x180] sm:$0xff]
    %v72 = vld [vmem:[#allocation2 + $0x188] sm:$0xff]
    %v73 = vld [vmem:[#allocation2 + $0x190] sm:$0xff]
    %v74 = vld [vmem:[#allocation2 + $0x198] sm:$0xff]
    %v75 = vld [vmem:[#allocation2 + $0x1a0] sm:$0xff]
    %v76 = vld [vmem:[#allocation2 + $0x1a8] sm:$0xff]
    %v77 = vld [vmem:[#allocation2 + $0x1b0] sm:$0xff]
    %v78 = vld [vmem:[#allocation2 + $0x1b8] sm:$0xff]
    %v79 = vld [vmem:[#allocation2 + $0x1c0] sm:$0xff]
    %v80 = vld [vmem:[#allocation2 + $0x1c8] sm:$0xff]
    %v81 = vld [vmem:[#allocation2 + $0x1d0] sm:$0xff]
    %v82 = vld [vmem:[#allocation2 + $0x1d8] sm:$0xff]
    %v83 = vld [vmem:[#allocation2 + $0x1e0] sm:$0xff]
    %v84 = vld [vmem:[#allocation2 + $0x1e8] sm:$0xff]
    %v85 = vld [vmem:[#allocation2 + $0x1f0] sm:$0xff]
    %v86 = vld [vmem:[#allocation2 + $0x1f8] sm:$0xff]
    %v87 = vld [vmem:[#allocation2 + $0x200] sm:$0xff]
    %v88 = vld [vmem:[#allocation2 + $0x208] sm:$0xff]
    %v89 = vld [vmem:[#allocation2 + $0x210] sm:$0xff]
    %v90 = vld [vmem:[#allocation2 + $0x218] sm:$0xff]
    %v91 = vld [vmem:[#allocation2 + $0x220] sm:$0xff]
    %v92 = vld [vmem:[#allocation2 + $0x228] sm:$0xff]
    %v93 = vld [vmem:[#allocation2 + $0x230] sm:$0xff]
    %v94 = vld [vmem:[#allocation2 + $0x238] sm:$0xff]
    %v95 = vld [vmem:[#allocation2 + $0x240] sm:$0xff]
    %v96 = vld [vmem:[#allocation2 + $0x248] sm:$0xff]
    %v97 = vld [vmem:[#allocation2 + $0x250] sm:$0xff]
    %v98 = vld [vmem:[#allocation2 + $0x258] sm:$0xff]
    %v99 = vld [vmem:[#allocation2 + $0x260] sm:$0xff]
    %v100 = vld [vmem:[#allocation2 + $0x268] sm:$0xff]
    %v101 = vld [vmem:[#allocation2 + $0x270] sm:$0xff]
    %v102 = vld [vmem:[#allocation2 + $0x278] sm:$0xff]
    %v103 = vld [vmem:[#allocation2 + $0x280] sm:$0xff]
    %v104 = vld [vmem:[#allocation2 + $0x288] sm:$0xff]
    %v105 = vld [vmem:[#allocation2 + $0x290] sm:$0xff]
    %v106 = vld [vmem:[#allocation2 + $0x298] sm:$0xff]
    %v107 = vld [vmem:[#allocation2 + $0x2a0] sm:$0xff]
    %v108 = vld [vmem:[#allocation2 + $0x2a8] sm:$0xff]
    %v109 = vld [vmem:[#allocation2 + $0x2b0] sm:$0xff]
    %v110 = vld [vmem:[#allocation2 + $0x2b8] sm:$0xff]
    %v111 = vld [vmem:[#allocation2 + $0x2c0] sm:$0xff]
    %v112 = vld [vmem:[#allocation2 + $0x2c8] sm:$0xff]
    %v113 = vld [vmem:[#allocation2 + $0x2d0] sm:$0xff]
    %v114 = vld [vmem:[#allocation2 + $0x2d8] sm:$0xff]
    %v115 = vld [vmem:[#allocation2 + $0x2e0] sm:$0xff]
    %v116 = vld [vmem:[#allocation2 + $0x2e8] sm:$0xff]
    %v117 = vld [vmem:[#allocation2 + $0x2f0] sm:$0xff]
    %v118 = vld [vmem:[#allocation2 + $0x2f8] sm:$0xff]
    %v119 = vld [vmem:[#allocation2 + $0x300] sm:$0xff]
    %v120 = vld [vmem:[#allocation2 + $0x308] sm:$0xff]
    %v121 = vld [vmem:[#allocation2 + $0x310] sm:$0xff]
    %v122 = vld [vmem:[#allocation2 + $0x318] sm:$0xff]
    %v123 = vld [vmem:[#allocation2 + $0x320] sm:$0xff]
    %v124 = vld [vmem:[#allocation2 + $0x328] sm:$0xff]
    %v125 = vld [vmem:[#allocation2 + $0x330] sm:$0xff]
    %v126 = vld [vmem:[#allocation2 + $0x338] sm:$0xff]
    %v127 = vld [vmem:[#allocation2 + $0x340] sm:$0xff]
    %v128 = vld [vmem:[#allocation2 + $0x348] sm:$0xff]
    %v129 = vld [vmem:[#allocation2 + $0x350] sm:$0xff]
    %v130 = vld [vmem:[#allocation2 + $0x358] sm:$0xff]
    %v131 = vld [vmem:[#allocation2 + $0x360] sm:$0xff]
    %v132 = vld [vmem:[#allocation2 + $0x368] sm:$0xff]
    %v133 = vld [vmem:[#allocation2 + $0x370] sm:$0xff]
    %v134 = vld [vmem:[#allocation2 + $0x378] sm:$0xff]
    %v135 = vld [vmem:[#allocation2 + $0x380] sm:$0xff]
    %v136 = vld [vmem:[#allocation2 + $0x388] sm:$0xff]
    %v137 = vld [vmem:[#allocation2 + $0x390] sm:$0xff]
    %v138 = vld [vmem:[#allocation2 + $0x398] sm:$0xff]
    %v139 = vld [vmem:[#allocation2 + $0x3a0] sm:$0xff]
    %v140 = vld [vmem:[#allocation2 + $0x3a8] sm:$0xff]
    %v141 = vld [vmem:[#allocation2 + $0x3b0] sm:$0xff]
    %v142 = vld [vmem:[#allocation2 + $0x3b8] sm:$0xff]
    %v143 = vld [vmem:[#allocation2 + $0x3c0] sm:$0xff]
    %v144 = vld [vmem:[#allocation2 + $0x3c8] sm:$0xff]
    %v145 = vld [vmem:[#allocation2 + $0x3d0] sm:$0xff]
    %v146 = vld [vmem:[#allocation2 + $0x3d8] sm:$0xff]
    %v147 = vld [vmem:[#allocation2 + $0x3e0] sm:$0xff]
    %v148 = vld [vmem:[#allocation2 + $0x3e8] sm:$0xff]
    %v149 = vld [vmem:[#allocation2 + $0x3f0] sm:$0xff]
    %v150 = vld [vmem:[#allocation2 + $0x3f8] sm:$0xff]
    %v151 = vld [vmem:[#allocation2 + $0x400] sm:$0xff]
    %v152 = vld [vmem:[#allocation2 + $0x408] sm:$0xff]
    %v153 = vld [vmem:[#allocation2 + $0x410] sm:$0xff]
    %v154 = vld [vmem:[#allocation2 + $0x418] sm:$0xff]
    %v155 = vld [vmem:[#allocation2 + $0x420] sm:$0xff]
    %v156 = vld [vmem:[#allocation2 + $0x428] sm:$0xff]
    %v157 = vld [vmem:[#allocation2 + $0x430] sm:$0xff]
    %v158 = vld [vmem:[#allocation2 + $0x438] sm:$0xff]
    %v159 = vld [vmem:[#allocation2 + $0x440] sm:$0xff]
    %v160 = vld [vmem:[#allocation2 + $0x448] sm:$0xff]
    %v161 = vld [vmem:[#allocation2 + $0x450] sm:$0xff]
    %v162 = vld [vmem:[#allocation2 + $0x458] sm:$0xff]
    %v163 = vld [vmem:[#allocation2 + $0x460] sm:$0xff]
    %v164 = vld [vmem:[#allocation2 + $0x468] sm:$0xff]
    %v165 = vld [vmem:[#allocation2 + $0x470] sm:$0xff]
    %v166 = vld [vmem:[#allocation2 + $0x478] sm:$0xff]
    %v167 = vsub.f32 %v25, %v23
    %v168 = vsub.f32 %v26, %v24
    %v169 = vsub.f32 %v27, %v25
    %v170 = vsub.f32 %v28, %v26
    %v171 = vsub.f32 %v29, %v27
    %v172 = vsub.f32 %v30, %v28
    %v173 = vsub.f32 %v31, %v29
    %v174 = vsub.f32 %v32, %v30
    %v175 = vsub.f32 %v33, %v31
    %v176 = vsub.f32 %v34, %v32
    %v177 = vsub.f32 %v35, %v33
    %v178 = vsub.f32 %v36, %v34
    %v179 = vsub.f32 %v37, %v35
    %v180 = vsub.f32 %v38, %v36
    %v181 = vsub.f32 %v39, %v37
    %v182 = vsub.f32 %v40, %v38
    %v183 = vsub.f32 %v41, %v39
    %v184 = vsub.f32 %v42, %v40
    %v185 = vsub.f32 %v43, %v41
    %v186 = vsub.f32 %v44, %v42
    %v187 = vsub.f32 %v45, %v43
    %v188 = vsub.f32 %v46, %v44
    %v189 = vsub.f32 %v49, %v47
    %v190 = vsub.f32 %v50, %v48
    %v191 = vsub.f32 %v51, %v49
    %v192 = vsub.f32 %v52, %v50
    %v193 = vsub.f32 %v53, %v51
    %v194 = vsub.f32 %v54, %v52
    %v195 = vsub.f32 %v55, %v53
    %v196 = vsub.f32 %v56, %v54
    %v197 = vsub.f32 %v57, %v55
    %v198 = vsub.f32 %v58, %v56
    %v199 = vsub.f32 %v59, %v57
    %v200 = vsub.f32 %v60, %v58
    %v201 = vsub.f32 %v61, %v59
    %v202 = vsub.f32 %v62, %v60
    %v203 = vsub.f32 %v63, %v61
    %v204 = vsub.f32 %v64, %v62
    %v205 = vsub.f32 %v65, %v63
    %v206 = vsub.f32 %v66, %v64
    %v207 = vsub.f32 %v67, %v65
    %v208 = vsub.f32 %v68, %v66
    %v209 = vsub.f32 %v69, %v67
    %v210 = vsub.f32 %v70, %v68
    %v211 = vsub.f32 %v73, %v71
    %v212 = vsub.f32 %v74, %v72
    %v213 = vsub.f32 %v75, %v73
    %v214 = vsub.f32 %v76, %v74
    %v215 = vsub.f32 %v77, %v75
    %v216 = vsub.f32 %v78, %v76
    %v217 = vsub.f32 %v79, %v77
    %v218 = vsub.f32 %v80, %v78
    %v219 = vsub.f32 %v81, %v79
    %v220 = vsub.f32 %v82, %v80
    %v221 = vsub.f32 %v83, %v81
    %v222 = vsub.f32 %v84, %v82
    %v223 = vsub.f32 %v85, %v83
    %v224 = vsub.f32 %v86, %v84
    %v225 = vsub.f32 %v87, %v85
    %v226 = vsub.f32 %v88, %v86
    %v227 = vsub.f32 %v89, %v87
    %v228 = vsub.f32 %v90, %v88
    %v229 = vsub.f32 %v91, %v89
    %v230 = vsub.f32 %v92, %v90
    %v231 = vsub.f32 %v93, %v91
    %v232 = vsub.f32 %v94, %v92
    %v233 = vsub.f32 %v97, %v95
    %v234 = vsub.f32 %v98, %v96
    %v235 = vsub.f32 %v99, %v97
    %v236 = vsub.f32 %v100, %v98
    %v237 = vsub.f32 %v101, %v99
    %v238 = vsub.f32 %v102, %v100
    %v239 = vsub.f32 %v103, %v101
    %v240 = vsub.f32 %v104, %v102
    %v241 = vsub.f32 %v105, %v103
    %v242 = vsub.f32 %v106, %v104
    %v243 = vsub.f32 %v107, %v105
    %v244 = vsub.f32 %v108, %v106
    %v245 = vsub.f32 %v109, %v107
    %v246 = vsub.f32 %v110, %v108
    %v247 = vsub.f32 %v111, %v109
    %v248 = vsub.f32 %v112, %v110
    %v249 = vsub.f32 %v113, %v111
    %v250 = vsub.f32 %v114, %v112
    %v251 = vsub.f32 %v115, %v113
    %v252 = vsub.f32 %v116, %v114
    %v253 = vsub.f32 %v117, %v115
    %v254 = vsub.f32 %v118, %v116
    %v255 = vsub.f32 %v121, %v119
    %v256 = vsub.f32 %v122, %v120
    %v257 = vsub.f32 %v123, %v121
    %v258 = vsub.f32 %v124, %v122
    %v259 = vsub.f32 %v125, %v123
    %v260 = vsub.f32 %v126, %v124
    %v261 = vsub.f32 %v127, %v125
    %v262 = vsub.f32 %v128, %v126
    %v263 = vsub.f32 %v129, %v127
    %v264 = vsub.f32 %v130, %v128
    %v265 = vsub.f32 %v131, %v129
    %v266 = vsub.f32 %v132, %v130
    %v267 = vsub.f32 %v133, %v131
    %v268 = vsub.f32 %v134, %v132
    %v269 = vsub.f32 %v135, %v133
    %v270 = vsub.f32 %v136, %v134
    %v271 = vsub.f32 %v137, %v135
    %v272 = vsub.f32 %v138, %v136
    %v273 = vsub.f32 %v139, %v137
    %v274 = vsub.f32 %v140, %v138
    %v275 = vsub.f32 %v141, %v139
    %v276 = vsub.f32 %v142, %v140
    %v277 = vsub.f32 %v145, %v143
    %v278 = vsub.f32 %v146, %v144
    %v279 = vsub.f32 %v147, %v145
    %v280 = vsub.f32 %v148, %v146
    %v281 = vsub.f32 %v149, %v147
    %v282 = vsub.f32 %v150, %v148
    %v283 = vsub.f32 %v151, %v149
    %v284 = vsub.f32 %v152, %v150
    %v285 = vsub.f32 %v153, %v151
    %v286 = vsub.f32 %v154, %v152
    %v287 = vsub.f32 %v155, %v153
    %v288 = vsub.f32 %v156, %v154
    %v289 = vsub.f32 %v157, %v155
    %v290 = vsub.f32 %v158, %v156
    %v291 = vsub.f32 %v159, %v157
    %v292 = vsub.f32 %v160, %v158
    %v293 = vsub.f32 %v161, %v159
    %v294 = vsub.f32 %v162, %v160
    %v295 = vsub.f32 %v163, %v161
    %v296 = vsub.f32 %v164, %v162
    %v297 = vsub.f32 %v165, %v163
    %v298 = vsub.f32 %v166, %v164
    %v299 = vand.u32 2147483647, %v167
    %v300 = vand.u32 2147483647, %v168
    %v301 = vand.u32 2147483647, %v169
    %v302 = vand.u32 2147483647, %v170
    %v303 = vand.u32 2147483647, %v171
    %v304 = vand.u32 2147483647, %v172
    %v305 = vand.u32 2147483647, %v173
    %v306 = vand.u32 2147483647, %v174
    %v307 = vand.u32 2147483647, %v175
    %v308 = vand.u32 2147483647, %v176
    %v309 = vand.u32 2147483647, %v177
    %v310 = vand.u32 2147483647, %v178
    %v311 = vand.u32 2147483647, %v179
    %v312 = vand.u32 2147483647, %v180
    %v313 = vand.u32 2147483647, %v181
    %v314 = vand.u32 2147483647, %v182
    %v315 = vand.u32 2147483647, %v183
    %v316 = vand.u32 2147483647, %v184
    %v317 = vand.u32 2147483647, %v185
    %v318 = vand.u32 2147483647, %v186
    %v319 = vand.u32 2147483647, %v187
    %v320 = vand.u32 2147483647, %v188
    %v321 = vand.u32 2147483647, %v189
    %v322 = vand.u32 2147483647, %v190
    %v323 = vand.u32 2147483647, %v191
    %v324 = vand.u32 2147483647, %v192
    %v325 = vand.u32 2147483647, %v193
    %v326 = vand.u32 2147483647, %v194
    %v327 = vand.u32 2147483647, %v195
    %v328 = vand.u32 2147483647, %v196
    %v329 = vand.u32 2147483647, %v197
    %v330 = vand.u32 2147483647, %v198
    %v331 = vand.u32 2147483647, %v199
    %v332 = vand.u32 2147483647, %v200
    %v333 = vand.u32 2147483647, %v201
    %v334 = vand.u32 2147483647, %v202
    %v335 = vand.u32 2147483647, %v203
    %v336 = vand.u32 2147483647, %v204
    %v337 = vand.u32 2147483647, %v205
    %v338 = vand.u32 2147483647, %v206
    %v339 = vand.u32 2147483647, %v207
    %v340 = vand.u32 2147483647, %v208
    %v341 = vand.u32 2147483647, %v209
    %v342 = vand.u32 2147483647, %v210
    %v343 = vand.u32 2147483647, %v211
    %v344 = vand.u32 2147483647, %v212
    %v345 = vand.u32 2147483647, %v213
    %v346 = vand.u32 2147483647, %v214
    %v347 = vand.u32 2147483647, %v215
    %v348 = vand.u32 2147483647, %v216
    %v349 = vand.u32 2147483647, %v217
    %v350 = vand.u32 2147483647, %v218
    %v351 = vand.u32 2147483647, %v219
    %v352 = vand.u32 2147483647, %v220
    %v353 = vand.u32 2147483647, %v221
    %v354 = vand.u32 2147483647, %v222
    %v355 = vand.u32 2147483647, %v223
    %v356 = vand.u32 2147483647, %v224
    %v357 = vand.u32 2147483647, %v225
    %v358 = vand.u32 2147483647, %v226
    %v359 = vand.u32 2147483647, %v227
    %v360 = vand.u32 2147483647, %v228
    %v361 = vand.u32 2147483647, %v229
    %v362 = vand.u32 2147483647, %v230
    %v363 = vand.u32 2147483647, %v231
    %v364 = vand.u32 2147483647, %v232
    %v365 = vand.u32 2147483647, %v233
    %v366 = vand.u32 2147483647, %v234
    %v367 = vand.u32 2147483647, %v235
    %v368 = vand.u32 2147483647, %v236
    %v369 = vand.u32 2147483647, %v237
    %v370 = vand.u32 2147483647, %v238
    %v371 = vand.u32 2147483647, %v239
    %v372 = vand.u32 2147483647, %v240
    %v373 = vand.u32 2147483647, %v241
    %v374 = vand.u32 2147483647, %v242
    %v375 = vand.u32 2147483647, %v243
    %v376 = vand.u32 2147483647, %v244
    %v377 = vand.u32 2147483647, %v245
    %v378 = vand.u32 2147483647, %v246
    %v379 = vand.u32 2147483647, %v247
    %v380 = vand.u32 2147483647, %v248
    %v381 = vand.u32 2147483647, %v249
    %v382 = vand.u32 2147483647, %v250
    %v383 = vand.u32 2147483647, %v251
    %v384 = vand.u32 2147483647, %v252
    %v385 = vand.u32 2147483647, %v253
    %v386 = vand.u32 2147483647, %v254
    %v387 = vand.u32 2147483647, %v255
    %v388 = vand.u32 2147483647, %v256
    %v389 = vand.u32 2147483647, %v257
    %v390 = vand.u32 2147483647, %v258
    %v391 = vand.u32 2147483647, %v259
    %v392 = vand.u32 2147483647, %v260
    %v393 = vand.u32 2147483647, %v261
    %v394 = vand.u32 2147483647, %v262
    %v395 = vand.u32 2147483647, %v263
    %v396 = vand.u32 2147483647, %v264
    %v397 = vand.u32 2147483647, %v265
    %v398 = vand.u32 2147483647, %v266
    %v399 = vand.u32 2147483647, %v267
    %v400 = vand.u32 2147483647, %v268
    %v401 = vand.u32 2147483647, %v269
    %v402 = vand.u32 2147483647, %v270
    %v403 = vand.u32 2147483647, %v271
    %v404 = vand.u32 2147483647, %v272
    %v405 = vand.u32 2147483647, %v273
    %v406 = vand.u32 2147483647, %v274
    %v407 = vand.u32 2147483647, %v275
    %v408 = vand.u32 2147483647, %v276
    %v409 = vand.u32 2147483647, %v277
    %v410 = vand.u32 2147483647, %v278
    %v411 = vand.u32 2147483647, %v279
    %v412 = vand.u32 2147483647, %v280
    %v413 = vand.u32 2147483647, %v281
    %v414 = vand.u32 2147483647, %v282
    %v415 = vand.u32 2147483647, %v283
    %v416 = vand.u32 2147483647, %v284
    %v417 = vand.u32 2147483647, %v285
    %v418 = vand.u32 2147483647, %v286
    %v419 = vand.u32 2147483647, %v287
    %v420 = vand.u32 2147483647, %v288
    %v421 = vand.u32 2147483647, %v289
    %v422 = vand.u32 2147483647, %v290
    %v423 = vand.u32 2147483647, %v291
    %v424 = vand.u32 2147483647, %v292
    %v425 = vand.u32 2147483647, %v293
    %v426 = vand.u32 2147483647, %v294
    %v427 = vand.u32 2147483647, %v295
    %v428 = vand.u32 2147483647, %v296
    %v429 = vand.u32 2147483647, %v297
    %v430 = vand.u32 2147483647, %v298
    %vm431 = vcmask 130048
    %v432 = vsel %vm431, %v299, 0.0
    %v433 = vsel %vm431, %v300, 0.0
    %v434 = vadd.f32 %v432, %v433
    %v435 = vsel %vm431, %v301, 0.0
    %v436 = vadd.f32 %v434, %v435
    %v437 = vsel %vm431, %v302, 0.0
    %v438 = vadd.f32 %v436, %v437
    %v439 = vsel %vm431, %v303, 0.0
    %v440 = vadd.f32 %v438, %v439
    %v441 = vsel %vm431, %v304, 0.0
    %v442 = vadd.f32 %v440, %v441
    %v443 = vsel %vm431, %v305, 0.0
    %v444 = vadd.f32 %v442, %v443
    %v445 = vsel %vm431, %v306, 0.0
    %v446 = vadd.f32 %v444, %v445
    %v447 = vsel %vm431, %v307, 0.0
    %v448 = vadd.f32 %v446, %v447
    %v449 = vsel %vm431, %v308, 0.0
    %v450 = vadd.f32 %v448, %v449
    %v451 = vsel %vm431, %v309, 0.0
    %v452 = vadd.f32 %v450, %v451
    %v453 = vsel %vm431, %v310, 0.0
    %v454 = vadd.f32 %v452, %v453
    %v455 = vsel %vm431, %v311, 0.0
    %v456 = vadd.f32 %v454, %v455
    %v457 = vsel %vm431, %v312, 0.0
    %v458 = vadd.f32 %v456, %v457
    %v459 = vsel %vm431, %v313, 0.0
    %v460 = vadd.f32 %v458, %v459
    %v461 = vsel %vm431, %v314, 0.0
    %v462 = vadd.f32 %v460, %v461
    %v463 = vsel %vm431, %v315, 0.0
    %v464 = vadd.f32 %v462, %v463
    %v465 = vsel %vm431, %v316, 0.0
    %v466 = vadd.f32 %v464, %v465
    %v467 = vsel %vm431, %v317, 0.0
    %v468 = vadd.f32 %v466, %v467
    %v469 = vsel %vm431, %v318, 0.0
    %v470 = vadd.f32 %v468, %v469
    %v471 = vsel %vm431, %v319, 0.0
    %v472 = vadd.f32 %v470, %v471
    %v473 = vsel %vm431, %v320, 0.0
    %v474 = vadd.f32 %v472, %v473
    %v475 = vsel %vm431, %v321, 0.0
    %v476 = vadd.f32 %v474, %v475
    %v477 = vsel %vm431, %v322, 0.0
    %v478 = vadd.f32 %v476, %v477
    %v479 = vsel %vm431, %v323, 0.0
    %v480 = vadd.f32 %v478, %v479
    %v481 = vsel %vm431, %v324, 0.0
    %v482 = vadd.f32 %v480, %v481
    %v483 = vsel %vm431, %v325, 0.0
    %v484 = vadd.f32 %v482, %v483
    %v485 = vsel %vm431, %v326, 0.0
    %v486 = vadd.f32 %v484, %v485
    %v487 = vsel %vm431, %v327, 0.0
    %v488 = vadd.f32 %v486, %v487
    %v489 = vsel %vm431, %v328, 0.0
    %v490 = vadd.f32 %v488, %v489
    %v491 = vsel %vm431, %v329, 0.0
    %v492 = vadd.f32 %v490, %v491
    %v493 = vsel %vm431, %v330, 0.0
    %v494 = vadd.f32 %v492, %v493
    %v495 = vsel %vm431, %v331, 0.0
    %v496 = vadd.f32 %v494, %v495
    %v497 = vsel %vm431, %v332, 0.0
    %v498 = vadd.f32 %v496, %v497
    %v499 = vsel %vm431, %v333, 0.0
    %v500 = vadd.f32 %v498, %v499
    %v501 = vsel %vm431, %v334, 0.0
    %v502 = vadd.f32 %v500, %v501
    %v503 = vsel %vm431, %v335, 0.0
    %v504 = vadd.f32 %v502, %v503
    %v505 = vsel %vm431, %v336, 0.0
    %v506 = vadd.f32 %v504, %v505
    %v507 = vsel %vm431, %v337, 0.0
    %v508 = vadd.f32 %v506, %v507
    %v509 = vsel %vm431, %v338, 0.0
    %v510 = vadd.f32 %v508, %v509
    %v511 = vsel %vm431, %v339, 0.0
    %v512 = vadd.f32 %v510, %v511
    %v513 = vsel %vm431, %v340, 0.0
    %v514 = vadd.f32 %v512, %v513
    %v515 = vsel %vm431, %v341, 0.0
    %v516 = vadd.f32 %v514, %v515
    %v517 = vsel %vm431, %v342, 0.0
    %v518 = vadd.f32 %v516, %v517
    %v519 = vsel %vm431, %v343, 0.0
    %v520 = vadd.f32 %v518, %v519
    %v521 = vsel %vm431, %v344, 0.0
    %v522 = vadd.f32 %v520, %v521
    %v523 = vsel %vm431, %v345, 0.0
    %v524 = vadd.f32 %v522, %v523
    %v525 = vsel %vm431, %v346, 0.0
    %v526 = vadd.f32 %v524, %v525
    %v527 = vsel %vm431, %v347, 0.0
    %v528 = vadd.f32 %v526, %v527
    %v529 = vsel %vm431, %v348, 0.0
    %v530 = vadd.f32 %v528, %v529
    %v531 = vsel %vm431, %v349, 0.0
    %v532 = vadd.f32 %v530, %v531
    %v533 = vsel %vm431, %v350, 0.0
    %v534 = vadd.f32 %v532, %v533
    %v535 = vsel %vm431, %v351, 0.0
    %v536 = vadd.f32 %v534, %v535
    %v537 = vsel %vm431, %v352, 0.0
    %v538 = vadd.f32 %v536, %v537
    %v539 = vsel %vm431, %v353, 0.0
    %v540 = vadd.f32 %v538, %v539
    %v541 = vsel %vm431, %v354, 0.0
    %v542 = vadd.f32 %v540, %v541
    %v543 = vsel %vm431, %v355, 0.0
    %v544 = vadd.f32 %v542, %v543
    %v545 = vsel %vm431, %v356, 0.0
    %v546 = vadd.f32 %v544, %v545
    %v547 = vsel %vm431, %v357, 0.0
    %v548 = vadd.f32 %v546, %v547
    %v549 = vsel %vm431, %v358, 0.0
    %v550 = vadd.f32 %v548, %v549
    %v551 = vsel %vm431, %v359, 0.0
    %v552 = vadd.f32 %v550, %v551
    %v553 = vsel %vm431, %v360, 0.0
    %v554 = vadd.f32 %v552, %v553
    %v555 = vsel %vm431, %v361, 0.0
    %v556 = vadd.f32 %v554, %v555
    %v557 = vsel %vm431, %v362, 0.0
    %v558 = vadd.f32 %v556, %v557
    %v559 = vsel %vm431, %v363, 0.0
    %v560 = vadd.f32 %v558, %v559
    %v561 = vsel %vm431, %v364, 0.0
    %v562 = vadd.f32 %v560, %v561
    %v563 = vsel %vm431, %v365, 0.0
    %v564 = vadd.f32 %v562, %v563
    %v565 = vsel %vm431, %v366, 0.0
    %v566 = vadd.f32 %v564, %v565
    %v567 = vsel %vm431, %v367, 0.0
    %v568 = vadd.f32 %v566, %v567
    %v569 = vsel %vm431, %v368, 0.0
    %v570 = vadd.f32 %v568, %v569
    %v571 = vsel %vm431, %v369, 0.0
    %v572 = vadd.f32 %v570, %v571
    %v573 = vsel %vm431, %v370, 0.0
    %v574 = vadd.f32 %v572, %v573
    %v575 = vsel %vm431, %v371, 0.0
    %v576 = vadd.f32 %v574, %v575
    %v577 = vsel %vm431, %v372, 0.0
    %v578 = vadd.f32 %v576, %v577
    %v579 = vsel %vm431, %v373, 0.0
    %v580 = vadd.f32 %v578, %v579
    %v581 = vsel %vm431, %v374, 0.0
    %v582 = vadd.f32 %v580, %v581
    %v583 = vsel %vm431, %v375, 0.0
    %v584 = vadd.f32 %v582, %v583
    %v585 = vsel %vm431, %v376, 0.0
    %v586 = vadd.f32 %v584, %v585
    %v587 = vsel %vm431, %v377, 0.0
    %v588 = vadd.f32 %v586, %v587
    %v589 = vsel %vm431, %v378, 0.0
    %v590 = vadd.f32 %v588, %v589
    %v591 = vsel %vm431, %v379, 0.0
    %v592 = vadd.f32 %v590, %v591
    %v593 = vsel %vm431, %v380, 0.0
    %v594 = vadd.f32 %v592, %v593
    %v595 = vsel %vm431, %v381, 0.0
    %v596 = vadd.f32 %v594, %v595
    %v597 = vsel %vm431, %v382, 0.0
    %v598 = vadd.f32 %v596, %v597
    %v599 = vsel %vm431, %v383, 0.0
    %v600 = vadd.f32 %v598, %v599
    %v601 = vsel %vm431, %v384, 0.0
    %v602 = vadd.f32 %v600, %v601
    %v603 = vsel %vm431, %v385, 0.0
    %v604 = vadd.f32 %v602, %v603
    %v605 = vsel %vm431, %v386, 0.0
    %v606 = vadd.f32 %v604, %v605
    %v607 = vsel %vm431, %v387, 0.0
    %v608 = vadd.f32 %v606, %v607
    %v609 = vsel %vm431, %v388, 0.0
    %v610 = vadd.f32 %v608, %v609
    %v611 = vsel %vm431, %v389, 0.0
    %v612 = vadd.f32 %v610, %v611
    %v613 = vsel %vm431, %v390, 0.0
    %v614 = vadd.f32 %v612, %v613
    %v615 = vsel %vm431, %v391, 0.0
    %v616 = vadd.f32 %v614, %v615
    %v617 = vsel %vm431, %v392, 0.0
    %v618 = vadd.f32 %v616, %v617
    %v619 = vsel %vm431, %v393, 0.0
    %v620 = vadd.f32 %v618, %v619
    %v621 = vsel %vm431, %v394, 0.0
    %v622 = vadd.f32 %v620, %v621
    %v623 = vsel %vm431, %v395, 0.0
    %v624 = vadd.f32 %v622, %v623
    %v625 = vsel %vm431, %v396, 0.0
    %v626 = vadd.f32 %v624, %v625
    %v627 = vsel %vm431, %v397, 0.0
    %v628 = vadd.f32 %v626, %v627
    %v629 = vsel %vm431, %v398, 0.0
    %v630 = vadd.f32 %v628, %v629
    %v631 = vsel %vm431, %v399, 0.0
    %v632 = vadd.f32 %v630, %v631
    %v633 = vsel %vm431, %v400, 0.0
    %v634 = vadd.f32 %v632, %v633
    %v635 = vsel %vm431, %v401, 0.0
    %v636 = vadd.f32 %v634, %v635
    %v637 = vsel %vm431, %v402, 0.0
    %v638 = vadd.f32 %v636, %v637
    %v639 = vsel %vm431, %v403, 0.0
    %v640 = vadd.f32 %v638, %v639
    %v641 = vsel %vm431, %v404, 0.0
    %v642 = vadd.f32 %v640, %v641
    %v643 = vsel %vm431, %v405, 0.0
    %v644 = vadd.f32 %v642, %v643
    %v645 = vsel %vm431, %v406, 0.0
    %v646 = vadd.f32 %v644, %v645
    %v647 = vsel %vm431, %v407, 0.0
    %v648 = vadd.f32 %v646, %v647
    %v649 = vsel %vm431, %v408, 0.0
    %v650 = vadd.f32 %v648, %v649
    %v651 = vsel %vm431, %v409, 0.0
    %v652 = vadd.f32 %v650, %v651
    %v653 = vsel %vm431, %v410, 0.0
    %v654 = vadd.f32 %v652, %v653
    %v655 = vsel %vm431, %v411, 0.0
    %v656 = vadd.f32 %v654, %v655
    %v657 = vsel %vm431, %v412, 0.0
    %v658 = vadd.f32 %v656, %v657
    %v659 = vsel %vm431, %v413, 0.0
    %v660 = vadd.f32 %v658, %v659
    %v661 = vsel %vm431, %v414, 0.0
    %v662 = vadd.f32 %v660, %v661
    %v663 = vsel %vm431, %v415, 0.0
    %v664 = vadd.f32 %v662, %v663
    %v665 = vsel %vm431, %v416, 0.0
    %v666 = vadd.f32 %v664, %v665
    %v667 = vsel %vm431, %v417, 0.0
    %v668 = vadd.f32 %v666, %v667
    %v669 = vsel %vm431, %v418, 0.0
    %v670 = vadd.f32 %v668, %v669
    %v671 = vsel %vm431, %v419, 0.0
    %v672 = vadd.f32 %v670, %v671
    %v673 = vsel %vm431, %v420, 0.0
    %v674 = vadd.f32 %v672, %v673
    %v675 = vsel %vm431, %v421, 0.0
    %v676 = vadd.f32 %v674, %v675
    %v677 = vsel %vm431, %v422, 0.0
    %v678 = vadd.f32 %v676, %v677
    %v679 = vsel %vm431, %v423, 0.0
    %v680 = vadd.f32 %v678, %v679
    %v681 = vsel %vm431, %v424, 0.0
    %v682 = vadd.f32 %v680, %v681
    %v683 = vsel %vm431, %v425, 0.0
    %v684 = vadd.f32 %v682, %v683
    %v685 = vsel %vm431, %v426, 0.0
    %v686 = vadd.f32 %v684, %v685
    %v687 = vsel %vm431, %v427, 0.0
    %v688 = vadd.f32 %v686, %v687
    %v689 = vsel %vm431, %v428, 0.0
    %v690 = vadd.f32 %v688, %v689
    %v691 = vsel %vm431, %v429, 0.0
    %v692 = vadd.f32 %v690, %v691
    %v693 = vsel %vm431, %v430, 0.0
    %v694 = vadd.f32 %v692, %v693
    %695 = vadd.xlane.f32.xlu0 %v694
    %v696 = vpop.xlane.xlu0 %695
    %v697 = vrot.slane %v696, 4
    %v698 = vadd.f32 %v696, %v697
    %v699 = vrot.slane %v698, 2
    %v700 = vadd.f32 %v698, %v699
    %v701 = vrot.slane %v700, 1
    %v702 = vadd.f32 %v700, %v701
    %s703 = vtos %v702
    %s704 = smul.f32 %s703, 5.9185608e-05
    %vm849 = vcmask 1040384
    %v850 = vrot.slane %v23, 7
    %v851 = vrot.slane %v24, 7
    %v852 = vsel %vm849, %v850, %v851
    %v853 = vrot.slane %v25, 7
    %v854 = vrot.slane %v26, 7
    %v855 = vsel %vm849, %v853, %v854
    %v856 = vrot.slane %v27, 7
    %v857 = vrot.slane %v28, 7
    %v858 = vsel %vm849, %v856, %v857
    %v859 = vrot.slane %v29, 7
    %v860 = vrot.slane %v30, 7
    %v861 = vsel %vm849, %v859, %v860
    %v862 = vrot.slane %v31, 7
    %v863 = vrot.slane %v32, 7
    %v864 = vsel %vm849, %v862, %v863
    %v865 = vrot.slane %v33, 7
    %v866 = vrot.slane %v34, 7
    %v867 = vsel %vm849, %v865, %v866
    %v868 = vrot.slane %v35, 7
    %v869 = vrot.slane %v36, 7
    %v870 = vsel %vm849, %v868, %v869
    %v871 = vrot.slane %v37, 7
    %v872 = vrot.slane %v38, 7
    %v873 = vsel %vm849, %v871, %v872
    %v874 = vrot.slane %v39, 7
    %v875 = vrot.slane %v40, 7
    %v876 = vsel %vm849, %v874, %v875
    %v877 = vrot.slane %v41, 7
    %v878 = vrot.slane %v42, 7
    %v879 = vsel %vm849, %v877, %v878
    %v880 = vrot.slane %v43, 7
    %v881 = vrot.slane %v44, 7
    %v882 = vsel %vm849, %v880, %v881
    %v883 = vrot.slane %v45, 7
    %v884 = vrot.slane %v46, 7
    %v885 = vsel %vm849, %v883, %v884
    %v886 = vrot.slane %v47, 7
    %v887 = vrot.slane %v48, 7
    %v888 = vsel %vm849, %v886, %v887
    %v889 = vrot.slane %v49, 7
    %v890 = vrot.slane %v50, 7
    %v891 = vsel %vm849, %v889, %v890
    %v892 = vrot.slane %v51, 7
    %v893 = vrot.slane %v52, 7
    %v894 = vsel %vm849, %v892, %v893
    %v895 = vrot.slane %v53, 7
    %v896 = vrot.slane %v54, 7
    %v897 = vsel %vm849, %v895, %v896
    %v898 = vrot.slane %v55, 7
    %v899 = vrot.slane %v56, 7
    %v900 = vsel %vm849, %v898, %v899
    %v901 = vrot.slane %v57, 7
    %v902 = vrot.slane %v58, 7
    %v903 = vsel %vm849, %v901, %v902
    %v904 = vrot.slane %v59, 7
    %v905 = vrot.slane %v60, 7
    %v906 = vsel %vm849, %v904, %v905
    %v907 = vrot.slane %v61, 7
    %v908 = vrot.slane %v62, 7
    %v909 = vsel %vm849, %v907, %v908
    %v910 = vrot.slane %v63, 7
    %v911 = vrot.slane %v64, 7
    %v912 = vsel %vm849, %v910, %v911
    %v913 = vrot.slane %v65, 7
    %v914 = vrot.slane %v66, 7
    %v915 = vsel %vm849, %v913, %v914
    %v916 = vrot.slane %v67, 7
    %v917 = vrot.slane %v68, 7
    %v918 = vsel %vm849, %v916, %v917
    %v919 = vrot.slane %v69, 7
    %v920 = vrot.slane %v70, 7
    %v921 = vsel %vm849, %v919, %v920
    %v922 = vrot.slane %v71, 7
    %v923 = vrot.slane %v72, 7
    %v924 = vsel %vm849, %v922, %v923
    %v925 = vrot.slane %v73, 7
    %v926 = vrot.slane %v74, 7
    %v927 = vsel %vm849, %v925, %v926
    %v928 = vrot.slane %v75, 7
    %v929 = vrot.slane %v76, 7
    %v930 = vsel %vm849, %v928, %v929
    %v931 = vrot.slane %v77, 7
    %v932 = vrot.slane %v78, 7
    %v933 = vsel %vm849, %v931, %v932
    %v934 = vrot.slane %v79, 7
    %v935 = vrot.slane %v80, 7
    %v936 = vsel %vm849, %v934, %v935
    %v937 = vrot.slane %v81, 7
    %v938 = vrot.slane %v82, 7
    %v939 = vsel %vm849, %v937, %v938
    %v940 = vrot.slane %v83, 7
    %v941 = vrot.slane %v84, 7
    %v942 = vsel %vm849, %v940, %v941
    %v943 = vrot.slane %v85, 7
    %v944 = vrot.slane %v86, 7
    %v945 = vsel %vm849, %v943, %v944
    %v946 = vrot.slane %v87, 7
    %v947 = vrot.slane %v88, 7
    %v948 = vsel %vm849, %v946, %v947
    %v949 = vrot.slane %v89, 7
    %v950 = vrot.slane %v90, 7
    %v951 = vsel %vm849, %v949, %v950
    %v952 = vrot.slane %v91, 7
    %v953 = vrot.slane %v92, 7
    %v954 = vsel %vm849, %v952, %v953
    %v955 = vrot.slane %v93, 7
    %v956 = vrot.slane %v94, 7
    %v957 = vsel %vm849, %v955, %v956
    %v958 = vrot.slane %v95, 7
    %v959 = vrot.slane %v96, 7
    %v960 = vsel %vm849, %v958, %v959
    %v961 = vrot.slane %v97, 7
    %v962 = vrot.slane %v98, 7
    %v963 = vsel %vm849, %v961, %v962
    %v964 = vrot.slane %v99, 7
    %v965 = vrot.slane %v100, 7
    %v966 = vsel %vm849, %v964, %v965
    %v967 = vrot.slane %v101, 7
    %v968 = vrot.slane %v102, 7
    %v969 = vsel %vm849, %v967, %v968
    %v970 = vrot.slane %v103, 7
    %v971 = vrot.slane %v104, 7
    %v972 = vsel %vm849, %v970, %v971
    %v973 = vrot.slane %v105, 7
    %v974 = vrot.slane %v106, 7
    %v975 = vsel %vm849, %v973, %v974
    %v976 = vrot.slane %v107, 7
    %v977 = vrot.slane %v108, 7
    %v978 = vsel %vm849, %v976, %v977
    %v979 = vrot.slane %v109, 7
    %v980 = vrot.slane %v110, 7
    %v981 = vsel %vm849, %v979, %v980
    %v982 = vrot.slane %v111, 7
    %v983 = vrot.slane %v112, 7
    %v984 = vsel %vm849, %v982, %v983
    %v985 = vrot.slane %v113, 7
    %v986 = vrot.slane %v114, 7
    %v987 = vsel %vm849, %v985, %v986
    %v988 = vrot.slane %v115, 7
    %v989 = vrot.slane %v116, 7
    %v990 = vsel %vm849, %v988, %v989
    %v991 = vrot.slane %v117, 7
    %v992 = vrot.slane %v118, 7
    %v993 = vsel %vm849, %v991, %v992
    %v994 = vrot.slane %v119, 7
    %v995 = vrot.slane %v120, 7
    %v996 = vsel %vm849, %v994, %v995
    %v997 = vrot.slane %v121, 7
    %v998 = vrot.slane %v122, 7
    %v999 = vsel %vm849, %v997, %v998
    %v1000 = vrot.slane %v123, 7
    %v1001 = vrot.slane %v124, 7
    %v1002 = vsel %vm849, %v1000, %v1001
    %v1003 = vrot.slane %v125, 7
    %v1004 = vrot.slane %v126, 7
    %v1005 = vsel %vm849, %v1003, %v1004
    %v1006 = vrot.slane %v127, 7
    %v1007 = vrot.slane %v128, 7
    %v1008 = vsel %vm849, %v1006, %v1007
    %v1009 = vrot.slane %v129, 7
    %v1010 = vrot.slane %v130, 7
    %v1011 = vsel %vm849, %v1009, %v1010
    %v1012 = vrot.slane %v131, 7
    %v1013 = vrot.slane %v132, 7
    %v1014 = vsel %vm849, %v1012, %v1013
    %v1015 = vrot.slane %v133, 7
    %v1016 = vrot.slane %v134, 7
    %v1017 = vsel %vm849, %v1015, %v1016
    %v1018 = vrot.slane %v135, 7
    %v1019 = vrot.slane %v136, 7
    %v1020 = vsel %vm849, %v1018, %v1019
    %v1021 = vrot.slane %v137, 7
    %v1022 = vrot.slane %v138, 7
    %v1023 = vsel %vm849, %v1021, %v1022
    %v1024 = vrot.slane %v139, 7
    %v1025 = vrot.slane %v140, 7
    %v1026 = vsel %vm849, %v1024, %v1025
    %v1027 = vrot.slane %v141, 7
    %v1028 = vrot.slane %v142, 7
    %v1029 = vsel %vm849, %v1027, %v1028
    %v1030 = vrot.slane %v143, 7
    %v1031 = vrot.slane %v144, 7
    %v1032 = vsel %vm849, %v1030, %v1031
    %v1033 = vrot.slane %v145, 7
    %v1034 = vrot.slane %v146, 7
    %v1035 = vsel %vm849, %v1033, %v1034
    %v1036 = vrot.slane %v147, 7
    %v1037 = vrot.slane %v148, 7
    %v1038 = vsel %vm849, %v1036, %v1037
    %v1039 = vrot.slane %v149, 7
    %v1040 = vrot.slane %v150, 7
    %v1041 = vsel %vm849, %v1039, %v1040
    %v1042 = vrot.slane %v151, 7
    %v1043 = vrot.slane %v152, 7
    %v1044 = vsel %vm849, %v1042, %v1043
    %v1045 = vrot.slane %v153, 7
    %v1046 = vrot.slane %v154, 7
    %v1047 = vsel %vm849, %v1045, %v1046
    %v1048 = vrot.slane %v155, 7
    %v1049 = vrot.slane %v156, 7
    %v1050 = vsel %vm849, %v1048, %v1049
    %v1051 = vrot.slane %v157, 7
    %v1052 = vrot.slane %v158, 7
    %v1053 = vsel %vm849, %v1051, %v1052
    %v1054 = vrot.slane %v159, 7
    %v1055 = vrot.slane %v160, 7
    %v1056 = vsel %vm849, %v1054, %v1055
    %v1057 = vrot.slane %v161, 7
    %v1058 = vrot.slane %v162, 7
    %v1059 = vsel %vm849, %v1057, %v1058
    %v1060 = vrot.slane %v163, 7
    %v1061 = vrot.slane %v164, 7
    %v1062 = vsel %vm849, %v1060, %v1061
    %v1063 = vrot.slane %v165, 7
    %v1064 = vrot.slane %v166, 7
    %v1065 = vsel %vm849, %v1063, %v1064
    %v1210 = vsub.f32 %v23, %v850
    %v1211 = vsub.f32 %v24, %v852
    %v1212 = vsub.f32 %v25, %v853
    %v1213 = vsub.f32 %v26, %v855
    %v1214 = vsub.f32 %v27, %v856
    %v1215 = vsub.f32 %v28, %v858
    %v1216 = vsub.f32 %v29, %v859
    %v1217 = vsub.f32 %v30, %v861
    %v1218 = vsub.f32 %v31, %v862
    %v1219 = vsub.f32 %v32, %v864
    %v1220 = vsub.f32 %v33, %v865
    %v1221 = vsub.f32 %v34, %v867
    %v1222 = vsub.f32 %v35, %v868
    %v1223 = vsub.f32 %v36, %v870
    %v1224 = vsub.f32 %v37, %v871
    %v1225 = vsub.f32 %v38, %v873
    %v1226 = vsub.f32 %v39, %v874
    %v1227 = vsub.f32 %v40, %v876
    %v1228 = vsub.f32 %v41, %v877
    %v1229 = vsub.f32 %v42, %v879
    %v1230 = vsub.f32 %v43, %v880
    %v1231 = vsub.f32 %v44, %v882
    %v1232 = vsub.f32 %v45, %v883
    %v1233 = vsub.f32 %v46, %v885
    %v1234 = vsub.f32 %v47, %v886
    %v1235 = vsub.f32 %v48, %v888
    %v1236 = vsub.f32 %v49, %v889
    %v1237 = vsub.f32 %v50, %v891
    %v1238 = vsub.f32 %v51, %v892
    %v1239 = vsub.f32 %v52, %v894
    %v1240 = vsub.f32 %v53, %v895
    %v1241 = vsub.f32 %v54, %v897
    %v1242 = vsub.f32 %v55, %v898
    %v1243 = vsub.f32 %v56, %v900
    %v1244 = vsub.f32 %v57, %v901
    %v1245 = vsub.f32 %v58, %v903
    %v1246 = vsub.f32 %v59, %v904
    %v1247 = vsub.f32 %v60, %v906
    %v1248 = vsub.f32 %v61, %v907
    %v1249 = vsub.f32 %v62, %v909
    %v1250 = vsub.f32 %v63, %v910
    %v1251 = vsub.f32 %v64, %v912
    %v1252 = vsub.f32 %v65, %v913
    %v1253 = vsub.f32 %v66, %v915
    %v1254 = vsub.f32 %v67, %v916
    %v1255 = vsub.f32 %v68, %v918
    %v1256 = vsub.f32 %v69, %v919
    %v1257 = vsub.f32 %v70, %v921
    %v1258 = vsub.f32 %v71, %v922
    %v1259 = vsub.f32 %v72, %v924
    %v1260 = vsub.f32 %v73, %v925
    %v1261 = vsub.f32 %v74, %v927
    %v1262 = vsub.f32 %v75, %v928
    %v1263 = vsub.f32 %v76, %v930
    %v1264 = vsub.f32 %v77, %v931
    %v1265 = vsub.f32 %v78, %v933
    %v1266 = vsub.f32 %v79, %v934
    %v1267 = vsub.f32 %v80, %v936
    %v1268 = vsub.f32 %v81, %v937
    %v1269 = vsub.f32 %v82, %v939
    %v1270 = vsub.f32 %v83, %v940
    %v1271 = vsub.f32 %v84, %v942
    %v1272 = vsub.f32 %v85, %v943
    %v1273 = vsub.f32 %v86, %v945
    %v1274 = vsub.f32 %v87, %v946
    %v1275 = vsub.f32 %v88, %v948
    %v1276 = vsub.f32 %v89, %v949
    %v1277 = vsub.f32 %v90, %v951
    %v1278 = vsub.f32 %v91, %v952
    %v1279 = vsub.f32 %v92, %v954
    %v1280 = vsub.f32 %v93, %v955
    %v1281 = vsub.f32 %v94, %v957
    %v1282 = vsub.f32 %v95, %v958
    %v1283 = vsub.f32 %v96, %v960
    %v1284 = vsub.f32 %v97, %v961
    %v1285 = vsub.f32 %v98, %v963
    %v1286 = vsub.f32 %v99, %v964
    %v1287 = vsub.f32 %v100, %v966
    %v1288 = vsub.f32 %v101, %v967
    %v1289 = vsub.f32 %v102, %v969
    %v1290 = vsub.f32 %v103, %v970
    %v1291 = vsub.f32 %v104, %v972
    %v1292 = vsub.f32 %v105, %v973
    %v1293 = vsub.f32 %v106, %v975
    %v1294 = vsub.f32 %v107, %v976
    %v1295 = vsub.f32 %v108, %v978
    %v1296 = vsub.f32 %v109, %v979
    %v1297 = vsub.f32 %v110, %v981
    %v1298 = vsub.f32 %v111, %v982
    %v1299 = vsub.f32 %v112, %v984
    %v1300 = vsub.f32 %v113, %v985
    %v1301 = vsub.f32 %v114, %v987
    %v1302 = vsub.f32 %v115, %v988
    %v1303 = vsub.f32 %v116, %v990
    %v1304 = vsub.f32 %v117, %v991
    %v1305 = vsub.f32 %v118, %v993
    %v1306 = vsub.f32 %v119, %v994
    %v1307 = vsub.f32 %v120, %v996
    %v1308 = vsub.f32 %v121, %v997
    %v1309 = vsub.f32 %v122, %v999
    %v1310 = vsub.f32 %v123, %v1000
    %v1311 = vsub.f32 %v124, %v1002
    %v1312 = vsub.f32 %v125, %v1003
    %v1313 = vsub.f32 %v126, %v1005
    %v1314 = vsub.f32 %v127, %v1006
    %v1315 = vsub.f32 %v128, %v1008
    %v1316 = vsub.f32 %v129, %v1009
    %v1317 = vsub.f32 %v130, %v1011
    %v1318 = vsub.f32 %v131, %v1012
    %v1319 = vsub.f32 %v132, %v1014
    %v1320 = vsub.f32 %v133, %v1015
    %v1321 = vsub.f32 %v134, %v1017
    %v1322 = vsub.f32 %v135, %v1018
    %v1323 = vsub.f32 %v136, %v1020
    %v1324 = vsub.f32 %v137, %v1021
    %v1325 = vsub.f32 %v138, %v1023
    %v1326 = vsub.f32 %v139, %v1024
    %v1327 = vsub.f32 %v140, %v1026
    %v1328 = vsub.f32 %v141, %v1027
    %v1329 = vsub.f32 %v142, %v1029
    %v1330 = vsub.f32 %v143, %v1030
    %v1331 = vsub.f32 %v144, %v1032
    %v1332 = vsub.f32 %v145, %v1033
    %v1333 = vsub.f32 %v146, %v1035
    %v1334 = vsub.f32 %v147, %v1036
    %v1335 = vsub.f32 %v148, %v1038
    %v1336 = vsub.f32 %v149, %v1039
    %v1337 = vsub.f32 %v150, %v1041
    %v1338 = vsub.f32 %v151, %v1042
    %v1339 = vsub.f32 %v152, %v1044
    %v1340 = vsub.f32 %v153, %v1045
    %v1341 = vsub.f32 %v154, %v1047
    %v1342 = vsub.f32 %v155, %v1048
    %v1343 = vsub.f32 %v156, %v1050
    %v1344 = vsub.f32 %v157, %v1051
    %v1345 = vsub.f32 %v158, %v1053
    %v1346 = vsub.f32 %v159, %v1054
    %v1347 = vsub.f32 %v160, %v1056
    %v1348 = vsub.f32 %v161, %v1057
    %v1349 = vsub.f32 %v162, %v1059
    %v1350 = vsub.f32 %v163, %v1060
    %v1351 = vsub.f32 %v164, %v1062
    %v1352 = vsub.f32 %v165, %v1063
    %v1353 = vsub.f32 %v166, %v1065
    %v1354 = vand.u32 2147483647, %v1210
    %v1355 = vand.u32 2147483647, %v1211
    %v1356 = vand.u32 2147483647, %v1212
    %v1357 = vand.u32 2147483647, %v1213
    %v1358 = vand.u32 2147483647, %v1214
    %v1359 = vand.u32 2147483647, %v1215
    %v1360 = vand.u32 2147483647, %v1216
    %v1361 = vand.u32 2147483647, %v1217
    %v1362 = vand.u32 2147483647, %v1218
    %v1363 = vand.u32 2147483647, %v1219
    %v1364 = vand.u32 2147483647, %v1220
    %v1365 = vand.u32 2147483647, %v1221
    %v1366 = vand.u32 2147483647, %v1222
    %v1367 = vand.u32 2147483647, %v1223
    %v1368 = vand.u32 2147483647, %v1224
    %v1369 = vand.u32 2147483647, %v1225
    %v1370 = vand.u32 2147483647, %v1226
    %v1371 = vand.u32 2147483647, %v1227
    %v1372 = vand.u32 2147483647, %v1228
    %v1373 = vand.u32 2147483647, %v1229
    %v1374 = vand.u32 2147483647, %v1230
    %v1375 = vand.u32 2147483647, %v1231
    %v1376 = vand.u32 2147483647, %v1232
    %v1377 = vand.u32 2147483647, %v1233
    %v1378 = vand.u32 2147483647, %v1234
    %v1379 = vand.u32 2147483647, %v1235
    %v1380 = vand.u32 2147483647, %v1236
    %v1381 = vand.u32 2147483647, %v1237
    %v1382 = vand.u32 2147483647, %v1238
    %v1383 = vand.u32 2147483647, %v1239
    %v1384 = vand.u32 2147483647, %v1240
    %v1385 = vand.u32 2147483647, %v1241
    %v1386 = vand.u32 2147483647, %v1242
    %v1387 = vand.u32 2147483647, %v1243
    %v1388 = vand.u32 2147483647, %v1244
    %v1389 = vand.u32 2147483647, %v1245
    %v1390 = vand.u32 2147483647, %v1246
    %v1391 = vand.u32 2147483647, %v1247
    %v1392 = vand.u32 2147483647, %v1248
    %v1393 = vand.u32 2147483647, %v1249
    %v1394 = vand.u32 2147483647, %v1250
    %v1395 = vand.u32 2147483647, %v1251
    %v1396 = vand.u32 2147483647, %v1252
    %v1397 = vand.u32 2147483647, %v1253
    %v1398 = vand.u32 2147483647, %v1254
    %v1399 = vand.u32 2147483647, %v1255
    %v1400 = vand.u32 2147483647, %v1256
    %v1401 = vand.u32 2147483647, %v1257
    %v1402 = vand.u32 2147483647, %v1258
    %v1403 = vand.u32 2147483647, %v1259
    %v1404 = vand.u32 2147483647, %v1260
    %v1405 = vand.u32 2147483647, %v1261
    %v1406 = vand.u32 2147483647, %v1262
    %v1407 = vand.u32 2147483647, %v1263
    %v1408 = vand.u32 2147483647, %v1264
    %v1409 = vand.u32 2147483647, %v1265
    %v1410 = vand.u32 2147483647, %v1266
    %v1411 = vand.u32 2147483647, %v1267
    %v1412 = vand.u32 2147483647, %v1268
    %v1413 = vand.u32 2147483647, %v1269
    %v1414 = vand.u32 2147483647, %v1270
    %v1415 = vand.u32 2147483647, %v1271
    %v1416 = vand.u32 2147483647, %v1272
    %v1417 = vand.u32 2147483647, %v1273
    %v1418 = vand.u32 2147483647, %v1274
    %v1419 = vand.u32 2147483647, %v1275
    %v1420 = vand.u32 2147483647, %v1276
    %v1421 = vand.u32 2147483647, %v1277
    %v1422 = vand.u32 2147483647, %v1278
    %v1423 = vand.u32 2147483647, %v1279
    %v1424 = vand.u32 2147483647, %v1280
    %v1425 = vand.u32 2147483647, %v1281
    %v1426 = vand.u32 2147483647, %v1282
    %v1427 = vand.u32 2147483647, %v1283
    %v1428 = vand.u32 2147483647, %v1284
    %v1429 = vand.u32 2147483647, %v1285
    %v1430 = vand.u32 2147483647, %v1286
    %v1431 = vand.u32 2147483647, %v1287
    %v1432 = vand.u32 2147483647, %v1288
    %v1433 = vand.u32 2147483647, %v1289
    %v1434 = vand.u32 2147483647, %v1290
    %v1435 = vand.u32 2147483647, %v1291
    %v1436 = vand.u32 2147483647, %v1292
    %v1437 = vand.u32 2147483647, %v1293
    %v1438 = vand.u32 2147483647, %v1294
    %v1439 = vand.u32 2147483647, %v1295
    %v1440 = vand.u32 2147483647, %v1296
    %v1441 = vand.u32 2147483647, %v1297
    %v1442 = vand.u32 2147483647, %v1298
    %v1443 = vand.u32 2147483647, %v1299
    %v1444 = vand.u32 2147483647, %v1300
    %v1445 = vand.u32 2147483647, %v1301
    %v1446 = vand.u32 2147483647, %v1302
    %v1447 = vand.u32 2147483647, %v1303
    %v1448 = vand.u32 2147483647, %v1304
    %v1449 = vand.u32 2147483647, %v1305
    %v1450 = vand.u32 2147483647, %v1306
    %v1451 = vand.u32 2147483647, %v1307
    %v1452 = vand.u32 2147483647, %v1308
    %v1453 = vand.u32 2147483647, %v1309
    %v1454 = vand.u32 2147483647, %v1310
    %v1455 = vand.u32 2147483647, %v1311
    %v1456 = vand.u32 2147483647, %v1312
    %v1457 = vand.u32 2147483647, %v1313
    %v1458 = vand.u32 2147483647, %v1314
    %v1459 = vand.u32 2147483647, %v1315
    %v1460 = vand.u32 2147483647, %v1316
    %v1461 = vand.u32 2147483647, %v1317
    %v1462 = vand.u32 2147483647, %v1318
    %v1463 = vand.u32 2147483647, %v1319
    %v1464 = vand.u32 2147483647, %v1320
    %v1465 = vand.u32 2147483647, %v1321
    %v1466 = vand.u32 2147483647, %v1322
    %v1467 = vand.u32 2147483647, %v1323
    %v1468 = vand.u32 2147483647, %v1324
    %v1469 = vand.u32 2147483647, %v1325
    %v1470 = vand.u32 2147483647, %v1326
    %v1471 = vand.u32 2147483647, %v1327
    %v1472 = vand.u32 2147483647, %v1328
    %v1473 = vand.u32 2147483647, %v1329
    %v1474 = vand.u32 2147483647, %v1330
    %v1475 = vand.u32 2147483647, %v1331
    %v1476 = vand.u32 2147483647, %v1332
    %v1477 = vand.u32 2147483647, %v1333
    %v1478 = vand.u32 2147483647, %v1334
    %v1479 = vand.u32 2147483647, %v1335
    %v1480 = vand.u32 2147483647, %v1336
    %v1481 = vand.u32 2147483647, %v1337
    %v1482 = vand.u32 2147483647, %v1338
    %v1483 = vand.u32 2147483647, %v1339
    %v1484 = vand.u32 2147483647, %v1340
    %v1485 = vand.u32 2147483647, %v1341
    %v1486 = vand.u32 2147483647, %v1342
    %v1487 = vand.u32 2147483647, %v1343
    %v1488 = vand.u32 2147483647, %v1344
    %v1489 = vand.u32 2147483647, %v1345
    %v1490 = vand.u32 2147483647, %v1346
    %v1491 = vand.u32 2147483647, %v1347
    %v1492 = vand.u32 2147483647, %v1348
    %v1493 = vand.u32 2147483647, %v1349
    %v1494 = vand.u32 2147483647, %v1350
    %v1495 = vand.u32 2147483647, %v1351
    %v1496 = vand.u32 2147483647, %v1352
    %v1497 = vand.u32 2147483647, %v1353
    %vm1642 = vcmask 1046528
    %v1643 = vrot.slane %v1354, 1
    %v1644 = vrot.slane %v1355, 1
    %v1645 = vsel %vm1642, %v1643, %v1644
    %v1646 = vrot.slane %v1356, 1
    %v1647 = vrot.slane %v1357, 1
    %v1648 = vsel %vm1642, %v1646, %v1647
    %v1649 = vrot.slane %v1358, 1
    %v1650 = vrot.slane %v1359, 1
    %v1651 = vsel %vm1642, %v1649, %v1650
    %v1652 = vrot.slane %v1360, 1
    %v1653 = vrot.slane %v1361, 1
    %v1654 = vsel %vm1642, %v1652, %v1653
    %v1655 = vrot.slane %v1362, 1
    %v1656 = vrot.slane %v1363, 1
    %v1657 = vsel %vm1642, %v1655, %v1656
    %v1658 = vrot.slane %v1364, 1
    %v1659 = vrot.slane %v1365, 1
    %v1660 = vsel %vm1642, %v1658, %v1659
    %v1661 = vrot.slane %v1366, 1
    %v1662 = vrot.slane %v1367, 1
    %v1663 = vsel %vm1642, %v1661, %v1662
    %v1664 = vrot.slane %v1368, 1
    %v1665 = vrot.slane %v1369, 1
    %v1666 = vsel %vm1642, %v1664, %v1665
    %v1667 = vrot.slane %v1370, 1
    %v1668 = vrot.slane %v1371, 1
    %v1669 = vsel %vm1642, %v1667, %v1668
    %v1670 = vrot.slane %v1372, 1
    %v1671 = vrot.slane %v1373, 1
    %v1672 = vsel %vm1642, %v1670, %v1671
    %v1673 = vrot.slane %v1374, 1
    %v1674 = vrot.slane %v1375, 1
    %v1675 = vsel %vm1642, %v1673, %v1674
    %v1676 = vrot.slane %v1376, 1
    %v1677 = vrot.slane %v1377, 1
    %v1678 = vsel %vm1642, %v1676, %v1677
    %v1679 = vrot.slane %v1378, 1
    %v1680 = vrot.slane %v1379, 1
    %v1681 = vsel %vm1642, %v1679, %v1680
    %v1682 = vrot.slane %v1380, 1
    %v1683 = vrot.slane %v1381, 1
    %v1684 = vsel %vm1642, %v1682, %v1683
    %v1685 = vrot.slane %v1382, 1
    %v1686 = vrot.slane %v1383, 1
    %v1687 = vsel %vm1642, %v1685, %v1686
    %v1688 = vrot.slane %v1384, 1
    %v1689 = vrot.slane %v1385, 1
    %v1690 = vsel %vm1642, %v1688, %v1689
    %v1691 = vrot.slane %v1386, 1
    %v1692 = vrot.slane %v1387, 1
    %v1693 = vsel %vm1642, %v1691, %v1692
    %v1694 = vrot.slane %v1388, 1
    %v1695 = vrot.slane %v1389, 1
    %v1696 = vsel %vm1642, %v1694, %v1695
    %v1697 = vrot.slane %v1390, 1
    %v1698 = vrot.slane %v1391, 1
    %v1699 = vsel %vm1642, %v1697, %v1698
    %v1700 = vrot.slane %v1392, 1
    %v1701 = vrot.slane %v1393, 1
    %v1702 = vsel %vm1642, %v1700, %v1701
    %v1703 = vrot.slane %v1394, 1
    %v1704 = vrot.slane %v1395, 1
    %v1705 = vsel %vm1642, %v1703, %v1704
    %v1706 = vrot.slane %v1396, 1
    %v1707 = vrot.slane %v1397, 1
    %v1708 = vsel %vm1642, %v1706, %v1707
    %v1709 = vrot.slane %v1398, 1
    %v1710 = vrot.slane %v1399, 1
    %v1711 = vsel %vm1642, %v1709, %v1710
    %v1712 = vrot.slane %v1400, 1
    %v1713 = vrot.slane %v1401, 1
    %v1714 = vsel %vm1642, %v1712, %v1713
    %v1715 = vrot.slane %v1402, 1
    %v1716 = vrot.slane %v1403, 1
    %v1717 = vsel %vm1642, %v1715, %v1716
    %v1718 = vrot.slane %v1404, 1
    %v1719 = vrot.slane %v1405, 1
    %v1720 = vsel %vm1642, %v1718, %v1719
    %v1721 = vrot.slane %v1406, 1
    %v1722 = vrot.slane %v1407, 1
    %v1723 = vsel %vm1642, %v1721, %v1722
    %v1724 = vrot.slane %v1408, 1
    %v1725 = vrot.slane %v1409, 1
    %v1726 = vsel %vm1642, %v1724, %v1725
    %v1727 = vrot.slane %v1410, 1
    %v1728 = vrot.slane %v1411, 1
    %v1729 = vsel %vm1642, %v1727, %v1728
    %v1730 = vrot.slane %v1412, 1
    %v1731 = vrot.slane %v1413, 1
    %v1732 = vsel %vm1642, %v1730, %v1731
    %v1733 = vrot.slane %v1414, 1
    %v1734 = vrot.slane %v1415, 1
    %v1735 = vsel %vm1642, %v1733, %v1734
    %v1736 = vrot.slane %v1416, 1
    %v1737 = vrot.slane %v1417, 1
    %v1738 = vsel %vm1642, %v1736, %v1737
    %v1739 = vrot.slane %v1418, 1
    %v1740 = vrot.slane %v1419, 1
    %v1741 = vsel %vm1642, %v1739, %v1740
    %v1742 = vrot.slane %v1420, 1
    %v1743 = vrot.slane %v1421, 1
    %v1744 = vsel %vm1642, %v1742, %v1743
    %v1745 = vrot.slane %v1422, 1
    %v1746 = vrot.slane %v1423, 1
    %v1747 = vsel %vm1642, %v1745, %v1746
    %v1748 = vrot.slane %v1424, 1
    %v1749 = vrot.slane %v1425, 1
    %v1750 = vsel %vm1642, %v1748, %v1749
    %v1751 = vrot.slane %v1426, 1
    %v1752 = vrot.slane %v1427, 1
    %v1753 = vsel %vm1642, %v1751, %v1752
    %v1754 = vrot.slane %v1428, 1
    %v1755 = vrot.slane %v1429, 1
    %v1756 = vsel %vm1642, %v1754, %v1755
    %v1757 = vrot.slane %v1430, 1
    %v1758 = vrot.slane %v1431, 1
    %v1759 = vsel %vm1642, %v1757, %v1758
    %v1760 = vrot.slane %v1432, 1
    %v1761 = vrot.slane %v1433, 1
    %v1762 = vsel %vm1642, %v1760, %v1761
    %v1763 = vrot.slane %v1434, 1
    %v1764 = vrot.slane %v1435, 1
    %v1765 = vsel %vm1642, %v1763, %v1764
    %v1766 = vrot.slane %v1436, 1
    %v1767 = vrot.slane %v1437, 1
    %v1768 = vsel %vm1642, %v1766, %v1767
    %v1769 = vrot.slane %v1438, 1
    %v1770 = vrot.slane %v1439, 1
    %v1771 = vsel %vm1642, %v1769, %v1770
    %v1772 = vrot.slane %v1440, 1
    %v1773 = vrot.slane %v1441, 1
    %v1774 = vsel %vm1642, %v1772, %v1773
    %v1775 = vrot.slane %v1442, 1
    %v1776 = vrot.slane %v1443, 1
    %v1777 = vsel %vm1642, %v1775, %v1776
    %v1778 = vrot.slane %v1444, 1
    %v1779 = vrot.slane %v1445, 1
    %v1780 = vsel %vm1642, %v1778, %v1779
    %v1781 = vrot.slane %v1446, 1
    %v1782 = vrot.slane %v1447, 1
    %v1783 = vsel %vm1642, %v1781, %v1782
    %v1784 = vrot.slane %v1448, 1
    %v1785 = vrot.slane %v1449, 1
    %v1786 = vsel %vm1642, %v1784, %v1785
    %v1787 = vrot.slane %v1450, 1
    %v1788 = vrot.slane %v1451, 1
    %v1789 = vsel %vm1642, %v1787, %v1788
    %v1790 = vrot.slane %v1452, 1
    %v1791 = vrot.slane %v1453, 1
    %v1792 = vsel %vm1642, %v1790, %v1791
    %v1793 = vrot.slane %v1454, 1
    %v1794 = vrot.slane %v1455, 1
    %v1795 = vsel %vm1642, %v1793, %v1794
    %v1796 = vrot.slane %v1456, 1
    %v1797 = vrot.slane %v1457, 1
    %v1798 = vsel %vm1642, %v1796, %v1797
    %v1799 = vrot.slane %v1458, 1
    %v1800 = vrot.slane %v1459, 1
    %v1801 = vsel %vm1642, %v1799, %v1800
    %v1802 = vrot.slane %v1460, 1
    %v1803 = vrot.slane %v1461, 1
    %v1804 = vsel %vm1642, %v1802, %v1803
    %v1805 = vrot.slane %v1462, 1
    %v1806 = vrot.slane %v1463, 1
    %v1807 = vsel %vm1642, %v1805, %v1806
    %v1808 = vrot.slane %v1464, 1
    %v1809 = vrot.slane %v1465, 1
    %v1810 = vsel %vm1642, %v1808, %v1809
    %v1811 = vrot.slane %v1466, 1
    %v1812 = vrot.slane %v1467, 1
    %v1813 = vsel %vm1642, %v1811, %v1812
    %v1814 = vrot.slane %v1468, 1
    %v1815 = vrot.slane %v1469, 1
    %v1816 = vsel %vm1642, %v1814, %v1815
    %v1817 = vrot.slane %v1470, 1
    %v1818 = vrot.slane %v1471, 1
    %v1819 = vsel %vm1642, %v1817, %v1818
    %v1820 = vrot.slane %v1472, 1
    %v1821 = vrot.slane %v1473, 1
    %v1822 = vsel %vm1642, %v1820, %v1821
    %v1823 = vrot.slane %v1474, 1
    %v1824 = vrot.slane %v1475, 1
    %v1825 = vsel %vm1642, %v1823, %v1824
    %v1826 = vrot.slane %v1476, 1
    %v1827 = vrot.slane %v1477, 1
    %v1828 = vsel %vm1642, %v1826, %v1827
    %v1829 = vrot.slane %v1478, 1
    %v1830 = vrot.slane %v1479, 1
    %v1831 = vsel %vm1642, %v1829, %v1830
    %v1832 = vrot.slane %v1480, 1
    %v1833 = vrot.slane %v1481, 1
    %v1834 = vsel %vm1642, %v1832, %v1833
    %v1835 = vrot.slane %v1482, 1
    %v1836 = vrot.slane %v1483, 1
    %v1837 = vsel %vm1642, %v1835, %v1836
    %v1838 = vrot.slane %v1484, 1
    %v1839 = vrot.slane %v1485, 1
    %v1840 = vsel %vm1642, %v1838, %v1839
    %v1841 = vrot.slane %v1486, 1
    %v1842 = vrot.slane %v1487, 1
    %v1843 = vsel %vm1642, %v1841, %v1842
    %v1844 = vrot.slane %v1488, 1
    %v1845 = vrot.slane %v1489, 1
    %v1846 = vsel %vm1642, %v1844, %v1845
    %v1847 = vrot.slane %v1490, 1
    %v1848 = vrot.slane %v1491, 1
    %v1849 = vsel %vm1642, %v1847, %v1848
    %v1850 = vrot.slane %v1492, 1
    %v1851 = vrot.slane %v1493, 1
    %v1852 = vsel %vm1642, %v1850, %v1851
    %v1853 = vrot.slane %v1494, 1
    %v1854 = vrot.slane %v1495, 1
    %v1855 = vsel %vm1642, %v1853, %v1854
    %v1856 = vrot.slane %v1496, 1
    %v1857 = vrot.slane %v1497, 1
    %v1858 = vsel %vm1642, %v1856, %v1857
    %v2003 = vsel %vm431, %v1645, 0.0
    %vm2004 = vcmask 129024
    %v2005 = vsel %vm2004, %v1644, 0.0
    %v2006 = vadd.f32 %v2003, %v2005
    %v2007 = vsel %vm431, %v1648, 0.0
    %v2008 = vadd.f32 %v2006, %v2007
    %v2009 = vsel %vm2004, %v1647, 0.0
    %v2010 = vadd.f32 %v2008, %v2009
    %v2011 = vsel %vm431, %v1651, 0.0
    %v2012 = vadd.f32 %v2010, %v2011
    %v2013 = vsel %vm2004, %v1650, 0.0
    %v2014 = vadd.f32 %v2012, %v2013
    %v2015 = vsel %vm431, %v1654, 0.0
    %v2016 = vadd.f32 %v2014, %v2015
    %v2017 = vsel %vm2004, %v1653, 0.0
    %v2018 = vadd.f32 %v2016, %v2017
    %v2019 = vsel %vm431, %v1657, 0.0
    %v2020 = vadd.f32 %v2018, %v2019
    %v2021 = vsel %vm2004, %v1656, 0.0
    %v2022 = vadd.f32 %v2020, %v2021
    %v2023 = vsel %vm431, %v1660, 0.0
    %v2024 = vadd.f32 %v2022, %v2023
    %v2025 = vsel %vm2004, %v1659, 0.0
    %v2026 = vadd.f32 %v2024, %v2025
    %v2027 = vsel %vm431, %v1663, 0.0
    %v2028 = vadd.f32 %v2026, %v2027
    %v2029 = vsel %vm2004, %v1662, 0.0
    %v2030 = vadd.f32 %v2028, %v2029
    %v2031 = vsel %vm431, %v1666, 0.0
    %v2032 = vadd.f32 %v2030, %v2031
    %v2033 = vsel %vm2004, %v1665, 0.0
    %v2034 = vadd.f32 %v2032, %v2033
    %v2035 = vsel %vm431, %v1669, 0.0
    %v2036 = vadd.f32 %v2034, %v2035
    %v2037 = vsel %vm2004, %v1668, 0.0
    %v2038 = vadd.f32 %v2036, %v2037
    %v2039 = vsel %vm431, %v1672, 0.0
    %v2040 = vadd.f32 %v2038, %v2039
    %v2041 = vsel %vm2004, %v1671, 0.0
    %v2042 = vadd.f32 %v2040, %v2041
    %v2043 = vsel %vm431, %v1675, 0.0
    %v2044 = vadd.f32 %v2042, %v2043
    %v2045 = vsel %vm2004, %v1674, 0.0
    %v2046 = vadd.f32 %v2044, %v2045
    %v2047 = vsel %vm431, %v1678, 0.0
    %v2048 = vadd.f32 %v2046, %v2047
    %v2049 = vsel %vm2004, %v1677, 0.0
    %v2050 = vadd.f32 %v2048, %v2049
    %v2051 = vsel %vm431, %v1681, 0.0
    %v2052 = vadd.f32 %v2050, %v2051
    %v2053 = vsel %vm2004, %v1680, 0.0
    %v2054 = vadd.f32 %v2052, %v2053
    %v2055 = vsel %vm431, %v1684, 0.0
    %v2056 = vadd.f32 %v2054, %v2055
    %v2057 = vsel %vm2004, %v1683, 0.0
    %v2058 = vadd.f32 %v2056, %v2057
    %v2059 = vsel %vm431, %v1687, 0.0
    %v2060 = vadd.f32 %v2058, %v2059
    %v2061 = vsel %vm2004, %v1686, 0.0
    %v2062 = vadd.f32 %v2060, %v2061
    %v2063 = vsel %vm431, %v1690, 0.0
    %v2064 = vadd.f32 %v2062, %v2063
    %v2065 = vsel %vm2004, %v1689, 0.0
    %v2066 = vadd.f32 %v2064, %v2065
    %v2067 = vsel %vm431, %v1693, 0.0
    %v2068 = vadd.f32 %v2066, %v2067
    %v2069 = vsel %vm2004, %v1692, 0.0
    %v2070 = vadd.f32 %v2068, %v2069
    %v2071 = vsel %vm431, %v1696, 0.0
    %v2072 = vadd.f32 %v2070, %v2071
    %v2073 = vsel %vm2004, %v1695, 0.0
    %v2074 = vadd.f32 %v2072, %v2073
    %v2075 = vsel %vm431, %v1699, 0.0
    %v2076 = vadd.f32 %v2074, %v2075
    %v2077 = vsel %vm2004, %v1698, 0.0
    %v2078 = vadd.f32 %v2076, %v2077
    %v2079 = vsel %vm431, %v1702, 0.0
    %v2080 = vadd.f32 %v2078, %v2079
    %v2081 = vsel %vm2004, %v1701, 0.0
    %v2082 = vadd.f32 %v2080, %v2081
    %v2083 = vsel %vm431, %v1705, 0.0
    %v2084 = vadd.f32 %v2082, %v2083
    %v2085 = vsel %vm2004, %v1704, 0.0
    %v2086 = vadd.f32 %v2084, %v2085
    %v2087 = vsel %vm431, %v1708, 0.0
    %v2088 = vadd.f32 %v2086, %v2087
    %v2089 = vsel %vm2004, %v1707, 0.0
    %v2090 = vadd.f32 %v2088, %v2089
    %v2091 = vsel %vm431, %v1711, 0.0
    %v2092 = vadd.f32 %v2090, %v2091
    %v2093 = vsel %vm2004, %v1710, 0.0
    %v2094 = vadd.f32 %v2092, %v2093
    %v2095 = vsel %vm431, %v1714, 0.0
    %v2096 = vadd.f32 %v2094, %v2095
    %v2097 = vsel %vm2004, %v1713, 0.0
    %v2098 = vadd.f32 %v2096, %v2097
    %v2099 = vsel %vm431, %v1717, 0.0
    %v2100 = vadd.f32 %v2098, %v2099
    %v2101 = vsel %vm2004, %v1716, 0.0
    %v2102 = vadd.f32 %v2100, %v2101
    %v2103 = vsel %vm431, %v1720, 0.0
    %v2104 = vadd.f32 %v2102, %v2103
    %v2105 = vsel %vm2004, %v1719, 0.0
    %v2106 = vadd.f32 %v2104, %v2105
    %v2107 = vsel %vm431, %v1723, 0.0
    %v2108 = vadd.f32 %v2106, %v2107
    %v2109 = vsel %vm2004, %v1722, 0.0
    %v2110 = vadd.f32 %v2108, %v2109
    %v2111 = vsel %vm431, %v1726, 0.0
    %v2112 = vadd.f32 %v2110, %v2111
    %v2113 = vsel %vm2004, %v1725, 0.0
    %v2114 = vadd.f32 %v2112, %v2113
    %v2115 = vsel %vm431, %v1729, 0.0
    %v2116 = vadd.f32 %v2114, %v2115
    %v2117 = vsel %vm2004, %v1728, 0.0
    %v2118 = vadd.f32 %v2116, %v2117
    %v2119 = vsel %vm431, %v1732, 0.0
    %v2120 = vadd.f32 %v2118, %v2119
    %v2121 = vsel %vm2004, %v1731, 0.0
    %v2122 = vadd.f32 %v2120, %v2121
    %v2123 = vsel %vm431, %v1735, 0.0
    %v2124 = vadd.f32 %v2122, %v2123
    %v2125 = vsel %vm2004, %v1734, 0.0
    %v2126 = vadd.f32 %v2124, %v2125
    %v2127 = vsel %vm431, %v1738, 0.0
    %v2128 = vadd.f32 %v2126, %v2127
    %v2129 = vsel %vm2004, %v1737, 0.0
    %v2130 = vadd.f32 %v2128, %v2129
    %v2131 = vsel %vm431, %v1741, 0.0
    %v2132 = vadd.f32 %v2130, %v2131
    %v2133 = vsel %vm2004, %v1740, 0.0
    %v2134 = vadd.f32 %v2132, %v2133
    %v2135 = vsel %vm431, %v1744, 0.0
    %v2136 = vadd.f32 %v2134, %v2135
    %v2137 = vsel %vm2004, %v1743, 0.0
    %v2138 = vadd.f32 %v2136, %v2137
    %v2139 = vsel %vm431, %v1747, 0.0
    %v2140 = vadd.f32 %v2138, %v2139
    %v2141 = vsel %vm2004, %v1746, 0.0
    %v2142 = vadd.f32 %v2140, %v2141
    %v2143 = vsel %vm431, %v1750, 0.0
    %v2144 = vadd.f32 %v2142, %v2143
    %v2145 = vsel %vm2004, %v1749, 0.0
    %v2146 = vadd.f32 %v2144, %v2145
    %v2147 = vsel %vm431, %v1753, 0.0
    %v2148 = vadd.f32 %v2146, %v2147
    %v2149 = vsel %vm2004, %v1752, 0.0
    %v2150 = vadd.f32 %v2148, %v2149
    %v2151 = vsel %vm431, %v1756, 0.0
    %v2152 = vadd.f32 %v2150, %v2151
    %v2153 = vsel %vm2004, %v1755, 0.0
    %v2154 = vadd.f32 %v2152, %v2153
    %v2155 = vsel %vm431, %v1759, 0.0
    %v2156 = vadd.f32 %v2154, %v2155
    %v2157 = vsel %vm2004, %v1758, 0.0
    %v2158 = vadd.f32 %v2156, %v2157
    %v2159 = vsel %vm431, %v1762, 0.0
    %v2160 = vadd.f32 %v2158, %v2159
    %v2161 = vsel %vm2004, %v1761, 0.0
    %v2162 = vadd.f32 %v2160, %v2161
    %v2163 = vsel %vm431, %v1765, 0.0
    %v2164 = vadd.f32 %v2162, %v2163
    %v2165 = vsel %vm2004, %v1764, 0.0
    %v2166 = vadd.f32 %v2164, %v2165
    %v2167 = vsel %vm431, %v1768, 0.0
    %v2168 = vadd.f32 %v2166, %v2167
    %v2169 = vsel %vm2004, %v1767, 0.0
    %v2170 = vadd.f32 %v2168, %v2169
    %v2171 = vsel %vm431, %v1771, 0.0
    %v2172 = vadd.f32 %v2170, %v2171
    %v2173 = vsel %vm2004, %v1770, 0.0
    %v2174 = vadd.f32 %v2172, %v2173
    %v2175 = vsel %vm431, %v1774, 0.0
    %v2176 = vadd.f32 %v2174, %v2175
    %v2177 = vsel %vm2004, %v1773, 0.0
    %v2178 = vadd.f32 %v2176, %v2177
    %v2179 = vsel %vm431, %v1777, 0.0
    %v2180 = vadd.f32 %v2178, %v2179
    %v2181 = vsel %vm2004, %v1776, 0.0
    %v2182 = vadd.f32 %v2180, %v2181
    %v2183 = vsel %vm431, %v1780, 0.0
    %v2184 = vadd.f32 %v2182, %v2183
    %v2185 = vsel %vm2004, %v1779, 0.0
    %v2186 = vadd.f32 %v2184, %v2185
    %v2187 = vsel %vm431, %v1783, 0.0
    %v2188 = vadd.f32 %v2186, %v2187
    %v2189 = vsel %vm2004, %v1782, 0.0
    %v2190 = vadd.f32 %v2188, %v2189
    %v2191 = vsel %vm431, %v1786, 0.0
    %v2192 = vadd.f32 %v2190, %v2191
    %v2193 = vsel %vm2004, %v1785, 0.0
    %v2194 = vadd.f32 %v2192, %v2193
    %v2195 = vsel %vm431, %v1789, 0.0
    %v2196 = vadd.f32 %v2194, %v2195
    %v2197 = vsel %vm2004, %v1788, 0.0
    %v2198 = vadd.f32 %v2196, %v2197
    %v2199 = vsel %vm431, %v1792, 0.0
    %v2200 = vadd.f32 %v2198, %v2199
    %v2201 = vsel %vm2004, %v1791, 0.0
    %v2202 = vadd.f32 %v2200, %v2201
    %v2203 = vsel %vm431, %v1795, 0.0
    %v2204 = vadd.f32 %v2202, %v2203
    %v2205 = vsel %vm2004, %v1794, 0.0
    %v2206 = vadd.f32 %v2204, %v2205
    %v2207 = vsel %vm431, %v1798, 0.0
    %v2208 = vadd.f32 %v2206, %v2207
    %v2209 = vsel %vm2004, %v1797, 0.0
    %v2210 = vadd.f32 %v2208, %v2209
    %v2211 = vsel %vm431, %v1801, 0.0
    %v2212 = vadd.f32 %v2210, %v2211
    %v2213 = vsel %vm2004, %v1800, 0.0
    %v2214 = vadd.f32 %v2212, %v2213
    %v2215 = vsel %vm431, %v1804, 0.0
    %v2216 = vadd.f32 %v2214, %v2215
    %v2217 = vsel %vm2004, %v1803, 0.0
    %v2218 = vadd.f32 %v2216, %v2217
    %v2219 = vsel %vm431, %v1807, 0.0
    %v2220 = vadd.f32 %v2218, %v2219
    %v2221 = vsel %vm2004, %v1806, 0.0
    %v2222 = vadd.f32 %v2220, %v2221
    %v2223 = vsel %vm431, %v1810, 0.0
    %v2224 = vadd.f32 %v2222, %v2223
    %v2225 = vsel %vm2004, %v1809, 0.0
    %v2226 = vadd.f32 %v2224, %v2225
    %v2227 = vsel %vm431, %v1813, 0.0
    %v2228 = vadd.f32 %v2226, %v2227
    %v2229 = vsel %vm2004, %v1812, 0.0
    %v2230 = vadd.f32 %v2228, %v2229
    %v2231 = vsel %vm431, %v1816, 0.0
    %v2232 = vadd.f32 %v2230, %v2231
    %v2233 = vsel %vm2004, %v1815, 0.0
    %v2234 = vadd.f32 %v2232, %v2233
    %v2235 = vsel %vm431, %v1819, 0.0
    %v2236 = vadd.f32 %v2234, %v2235
    %v2237 = vsel %vm2004, %v1818, 0.0
    %v2238 = vadd.f32 %v2236, %v2237
    %v2239 = vsel %vm431, %v1822, 0.0
    %v2240 = vadd.f32 %v2238, %v2239
    %v2241 = vsel %vm2004, %v1821, 0.0
    %v2242 = vadd.f32 %v2240, %v2241
    %v2243 = vsel %vm431, %v1825, 0.0
    %v2244 = vadd.f32 %v2242, %v2243
    %v2245 = vsel %vm2004, %v1824, 0.0
    %v2246 = vadd.f32 %v2244, %v2245
    %v2247 = vsel %vm431, %v1828, 0.0
    %v2248 = vadd.f32 %v2246, %v2247
    %v2249 = vsel %vm2004, %v1827, 0.0
    %v2250 = vadd.f32 %v2248, %v2249
    %v2251 = vsel %vm431, %v1831, 0.0
    %v2252 = vadd.f32 %v2250, %v2251
    %v2253 = vsel %vm2004, %v1830, 0.0
    %v2254 = vadd.f32 %v2252, %v2253
    %v2255 = vsel %vm431, %v1834, 0.0
    %v2256 = vadd.f32 %v2254, %v2255
    %v2257 = vsel %vm2004, %v1833, 0.0
    %v2258 = vadd.f32 %v2256, %v2257
    %v2259 = vsel %vm431, %v1837, 0.0
    %v2260 = vadd.f32 %v2258, %v2259
    %v2261 = vsel %vm2004, %v1836, 0.0
    %v2262 = vadd.f32 %v2260, %v2261
    %v2263 = vsel %vm431, %v1840, 0.0
    %v2264 = vadd.f32 %v2262, %v2263
    %v2265 = vsel %vm2004, %v1839, 0.0
    %v2266 = vadd.f32 %v2264, %v2265
    %v2267 = vsel %vm431, %v1843, 0.0
    %v2268 = vadd.f32 %v2266, %v2267
    %v2269 = vsel %vm2004, %v1842, 0.0
    %v2270 = vadd.f32 %v2268, %v2269
    %v2271 = vsel %vm431, %v1846, 0.0
    %v2272 = vadd.f32 %v2270, %v2271
    %v2273 = vsel %vm2004, %v1845, 0.0
    %v2274 = vadd.f32 %v2272, %v2273
    %v2275 = vsel %vm431, %v1849, 0.0
    %v2276 = vadd.f32 %v2274, %v2275
    %v2277 = vsel %vm2004, %v1848, 0.0
    %v2278 = vadd.f32 %v2276, %v2277
    %v2279 = vsel %vm431, %v1852, 0.0
    %v2280 = vadd.f32 %v2278, %v2279
    %v2281 = vsel %vm2004, %v1851, 0.0
    %v2282 = vadd.f32 %v2280, %v2281
    %v2283 = vsel %vm431, %v1855, 0.0
    %v2284 = vadd.f32 %v2282, %v2283
    %v2285 = vsel %vm2004, %v1854, 0.0
    %v2286 = vadd.f32 %v2284, %v2285
    %v2287 = vsel %vm431, %v1858, 0.0
    %v2288 = vadd.f32 %v2286, %v2287
    %v2289 = vsel %vm2004, %v1857, 0.0
    %v2290 = vadd.f32 %v2288, %v2289
    %2291 = vadd.xlane.f32.xlu0 %v2290
    %v2292 = vpop.xlane.xlu0 %2291
    %v2293 = vrot.slane %v2292, 4
    %v2294 = vadd.f32 %v2292, %v2293
    %v2295 = vrot.slane %v2294, 2
    %v2296 = vadd.f32 %v2294, %v2295
    %v2297 = vrot.slane %v2296, 1
    %v2298 = vadd.f32 %v2296, %v2297
    %s2299 = vtos %v2298
    %s2300 = smul.f32 %s2299, 5.787037e-05
    %s2301 = sadd.f32 %s704, %s2300
    %2302 = vrot.lane.b32.xlu0 %v23, 1
    %v2303 = vpop.permute.xlu0 %2302
    %2304 = vrot.lane.b32.xlu0 %v24, 1
    %v2305 = vpop.permute.xlu0 %2304
    %2306 = vrot.lane.b32.xlu0 %v25, 1
    %v2307 = vpop.permute.xlu0 %2306
    %2308 = vrot.lane.b32.xlu0 %v26, 1
    %v2309 = vpop.permute.xlu0 %2308
    %2310 = vrot.lane.b32.xlu0 %v27, 1
    %v2311 = vpop.permute.xlu0 %2310
    %2312 = vrot.lane.b32.xlu0 %v28, 1
    %v2313 = vpop.permute.xlu0 %2312
    %2314 = vrot.lane.b32.xlu0 %v29, 1
    %v2315 = vpop.permute.xlu0 %2314
    %2316 = vrot.lane.b32.xlu0 %v30, 1
    %v2317 = vpop.permute.xlu0 %2316
    %2318 = vrot.lane.b32.xlu0 %v31, 1
    %v2319 = vpop.permute.xlu0 %2318
    %2320 = vrot.lane.b32.xlu0 %v32, 1
    %v2321 = vpop.permute.xlu0 %2320
    %2322 = vrot.lane.b32.xlu0 %v33, 1
    %v2323 = vpop.permute.xlu0 %2322
    %2324 = vrot.lane.b32.xlu0 %v34, 1
    %v2325 = vpop.permute.xlu0 %2324
    %2326 = vrot.lane.b32.xlu0 %v35, 1
    %v2327 = vpop.permute.xlu0 %2326
    %2328 = vrot.lane.b32.xlu0 %v36, 1
    %v2329 = vpop.permute.xlu0 %2328
    %2330 = vrot.lane.b32.xlu0 %v37, 1
    %v2331 = vpop.permute.xlu0 %2330
    %2332 = vrot.lane.b32.xlu0 %v38, 1
    %v2333 = vpop.permute.xlu0 %2332
    %2334 = vrot.lane.b32.xlu0 %v39, 1
    %v2335 = vpop.permute.xlu0 %2334
    %2336 = vrot.lane.b32.xlu0 %v40, 1
    %v2337 = vpop.permute.xlu0 %2336
    %2338 = vrot.lane.b32.xlu0 %v41, 1
    %v2339 = vpop.permute.xlu0 %2338
    %2340 = vrot.lane.b32.xlu0 %v42, 1
    %v2341 = vpop.permute.xlu0 %2340
    %2342 = vrot.lane.b32.xlu0 %v43, 1
    %v2343 = vpop.permute.xlu0 %2342
    %2344 = vrot.lane.b32.xlu0 %v44, 1
    %v2345 = vpop.permute.xlu0 %2344
    %2346 = vrot.lane.b32.xlu0 %v45, 1
    %v2347 = vpop.permute.xlu0 %2346
    %2348 = vrot.lane.b32.xlu0 %v46, 1
    %v2349 = vpop.permute.xlu0 %2348
    %2350 = vrot.lane.b32.xlu0 %v47, 1
    %v2351 = vpop.permute.xlu0 %2350
    %2352 = vrot.lane.b32.xlu0 %v48, 1
    %v2353 = vpop.permute.xlu0 %2352
    %2354 = vrot.lane.b32.xlu0 %v49, 1
    %v2355 = vpop.permute.xlu0 %2354
    %2356 = vrot.lane.b32.xlu0 %v50, 1
    %v2357 = vpop.permute.xlu0 %2356
    %2358 = vrot.lane.b32.xlu0 %v51, 1
    %v2359 = vpop.permute.xlu0 %2358
    %2360 = vrot.lane.b32.xlu0 %v52, 1
    %v2361 = vpop.permute.xlu0 %2360
    %2362 = vrot.lane.b32.xlu0 %v53, 1
    %v2363 = vpop.permute.xlu0 %2362
    %2364 = vrot.lane.b32.xlu0 %v54, 1
    %v2365 = vpop.permute.xlu0 %2364
    %2366 = vrot.lane.b32.xlu0 %v55, 1
    %v2367 = vpop.permute.xlu0 %2366
    %2368 = vrot.lane.b32.xlu0 %v56, 1
    %v2369 = vpop.permute.xlu0 %2368
    %2370 = vrot.lane.b32.xlu0 %v57, 1
    %v2371 = vpop.permute.xlu0 %2370
    %2372 = vrot.lane.b32.xlu0 %v58, 1
    %v2373 = vpop.permute.xlu0 %2372
    %2374 = vrot.lane.b32.xlu0 %v59, 1
    %v2375 = vpop.permute.xlu0 %2374
    %2376 = vrot.lane.b32.xlu0 %v60, 1
    %v2377 = vpop.permute.xlu0 %2376
    %2378 = vrot.lane.b32.xlu0 %v61, 1
    %v2379 = vpop.permute.xlu0 %2378
    %2380 = vrot.lane.b32.xlu0 %v62, 1
    %v2381 = vpop.permute.xlu0 %2380
    %2382 = vrot.lane.b32.xlu0 %v63, 1
    %v2383 = vpop.permute.xlu0 %2382
    %2384 = vrot.lane.b32.xlu0 %v64, 1
    %v2385 = vpop.permute.xlu0 %2384
    %2386 = vrot.lane.b32.xlu0 %v65, 1
    %v2387 = vpop.permute.xlu0 %2386
    %2388 = vrot.lane.b32.xlu0 %v66, 1
    %v2389 = vpop.permute.xlu0 %2388
    %2390 = vrot.lane.b32.xlu0 %v67, 1
    %v2391 = vpop.permute.xlu0 %2390
    %2392 = vrot.lane.b32.xlu0 %v68, 1
    %v2393 = vpop.permute.xlu0 %2392
    %2394 = vrot.lane.b32.xlu0 %v69, 1
    %v2395 = vpop.permute.xlu0 %2394
    %2396 = vrot.lane.b32.xlu0 %v70, 1
    %v2397 = vpop.permute.xlu0 %2396
    %2398 = vrot.lane.b32.xlu0 %v71, 1
    %v2399 = vpop.permute.xlu0 %2398
    %2400 = vrot.lane.b32.xlu0 %v72, 1
    %v2401 = vpop.permute.xlu0 %2400
    %2402 = vrot.lane.b32.xlu0 %v73, 1
    %v2403 = vpop.permute.xlu0 %2402
    %2404 = vrot.lane.b32.xlu0 %v74, 1
    %v2405 = vpop.permute.xlu0 %2404
    %2406 = vrot.lane.b32.xlu0 %v75, 1
    %v2407 = vpop.permute.xlu0 %2406
    %2408 = vrot.lane.b32.xlu0 %v76, 1
    %v2409 = vpop.permute.xlu0 %2408
    %2410 = vrot.lane.b32.xlu0 %v77, 1
    %v2411 = vpop.permute.xlu0 %2410
    %2412 = vrot.lane.b32.xlu0 %v78, 1
    %v2413 = vpop.permute.xlu0 %2412
    %2414 = vrot.lane.b32.xlu0 %v79, 1
    %v2415 = vpop.permute.xlu0 %2414
    %2416 = vrot.lane.b32.xlu0 %v80, 1
    %v2417 = vpop.permute.xlu0 %2416
    %2418 = vrot.lane.b32.xlu0 %v81, 1
    %v2419 = vpop.permute.xlu0 %2418
    %2420 = vrot.lane.b32.xlu0 %v82, 1
    %v2421 = vpop.permute.xlu0 %2420
    %2422 = vrot.lane.b32.xlu0 %v83, 1
    %v2423 = vpop.permute.xlu0 %2422
    %2424 = vrot.lane.b32.xlu0 %v84, 1
    %v2425 = vpop.permute.xlu0 %2424
    %2426 = vrot.lane.b32.xlu0 %v85, 1
    %v2427 = vpop.permute.xlu0 %2426
    %2428 = vrot.lane.b32.xlu0 %v86, 1
    %v2429 = vpop.permute.xlu0 %2428
    %2430 = vrot.lane.b32.xlu0 %v87, 1
    %v2431 = vpop.permute.xlu0 %2430
    %2432 = vrot.lane.b32.xlu0 %v88, 1
    %v2433 = vpop.permute.xlu0 %2432
    %2434 = vrot.lane.b32.xlu0 %v89, 1
    %v2435 = vpop.permute.xlu0 %2434
    %2436 = vrot.lane.b32.xlu0 %v90, 1
    %v2437 = vpop.permute.xlu0 %2436
    %2438 = vrot.lane.b32.xlu0 %v91, 1
    %v2439 = vpop.permute.xlu0 %2438
    %2440 = vrot.lane.b32.xlu0 %v92, 1
    %v2441 = vpop.permute.xlu0 %2440
    %2442 = vrot.lane.b32.xlu0 %v93, 1
    %v2443 = vpop.permute.xlu0 %2442
    %2444 = vrot.lane.b32.xlu0 %v94, 1
    %v2445 = vpop.permute.xlu0 %2444
    %2446 = vrot.lane.b32.xlu0 %v95, 1
    %v2447 = vpop.permute.xlu0 %2446
    %2448 = vrot.lane.b32.xlu0 %v96, 1
    %v2449 = vpop.permute.xlu0 %2448
    %2450 = vrot.lane.b32.xlu0 %v97, 1
    %v2451 = vpop.permute.xlu0 %2450
    %2452 = vrot.lane.b32.xlu0 %v98, 1
    %v2453 = vpop.permute.xlu0 %2452
    %2454 = vrot.lane.b32.xlu0 %v99, 1
    %v2455 = vpop.permute.xlu0 %2454
    %2456 = vrot.lane.b32.xlu0 %v100, 1
    %v2457 = vpop.permute.xlu0 %2456
    %2458 = vrot.lane.b32.xlu0 %v101, 1
    %v2459 = vpop.permute.xlu0 %2458
    %2460 = vrot.lane.b32.xlu0 %v102, 1
    %v2461 = vpop.permute.xlu0 %2460
    %2462 = vrot.lane.b32.xlu0 %v103, 1
    %v2463 = vpop.permute.xlu0 %2462
    %2464 = vrot.lane.b32.xlu0 %v104, 1
    %v2465 = vpop.permute.xlu0 %2464
    %2466 = vrot.lane.b32.xlu0 %v105, 1
    %v2467 = vpop.permute.xlu0 %2466
    %2468 = vrot.lane.b32.xlu0 %v106, 1
    %v2469 = vpop.permute.xlu0 %2468
    %2470 = vrot.lane.b32.xlu0 %v107, 1
    %v2471 = vpop.permute.xlu0 %2470
    %2472 = vrot.lane.b32.xlu0 %v108, 1
    %v2473 = vpop.permute.xlu0 %2472
    %2474 = vrot.lane.b32.xlu0 %v109, 1
    %v2475 = vpop.permute.xlu0 %2474
    %2476 = vrot.lane.b32.xlu0 %v110, 1
    %v2477 = vpop.permute.xlu0 %2476
    %2478 = vrot.lane.b32.xlu0 %v111, 1
    %v2479 = vpop.permute.xlu0 %2478
    %2480 = vrot.lane.b32.xlu0 %v112, 1
    %v2481 = vpop.permute.xlu0 %2480
    %2482 = vrot.lane.b32.xlu0 %v113, 1
    %v2483 = vpop.permute.xlu0 %2482
    %2484 = vrot.lane.b32.xlu0 %v114, 1
    %v2485 = vpop.permute.xlu0 %2484
    %2486 = vrot.lane.b32.xlu0 %v115, 1
    %v2487 = vpop.permute.xlu0 %2486
    %2488 = vrot.lane.b32.xlu0 %v116, 1
    %v2489 = vpop.permute.xlu0 %2488
    %2490 = vrot.lane.b32.xlu0 %v117, 1
    %v2491 = vpop.permute.xlu0 %2490
    %2492 = vrot.lane.b32.xlu0 %v118, 1
    %v2493 = vpop.permute.xlu0 %2492
    %2494 = vrot.lane.b32.xlu0 %v119, 1
    %v2495 = vpop.permute.xlu0 %2494
    %2496 = vrot.lane.b32.xlu0 %v120, 1
    %v2497 = vpop.permute.xlu0 %2496
    %2498 = vrot.lane.b32.xlu0 %v121, 1
    %v2499 = vpop.permute.xlu0 %2498
    %2500 = vrot.lane.b32.xlu0 %v122, 1
    %v2501 = vpop.permute.xlu0 %2500
    %2502 = vrot.lane.b32.xlu0 %v123, 1
    %v2503 = vpop.permute.xlu0 %2502
    %2504 = vrot.lane.b32.xlu0 %v124, 1
    %v2505 = vpop.permute.xlu0 %2504
    %2506 = vrot.lane.b32.xlu0 %v125, 1
    %v2507 = vpop.permute.xlu0 %2506
    %2508 = vrot.lane.b32.xlu0 %v126, 1
    %v2509 = vpop.permute.xlu0 %2508
    %2510 = vrot.lane.b32.xlu0 %v127, 1
    %v2511 = vpop.permute.xlu0 %2510
    %2512 = vrot.lane.b32.xlu0 %v128, 1
    %v2513 = vpop.permute.xlu0 %2512
    %2514 = vrot.lane.b32.xlu0 %v129, 1
    %v2515 = vpop.permute.xlu0 %2514
    %2516 = vrot.lane.b32.xlu0 %v130, 1
    %v2517 = vpop.permute.xlu0 %2516
    %2518 = vrot.lane.b32.xlu0 %v131, 1
    %v2519 = vpop.permute.xlu0 %2518
    %2520 = vrot.lane.b32.xlu0 %v132, 1
    %v2521 = vpop.permute.xlu0 %2520
    %2522 = vrot.lane.b32.xlu0 %v133, 1
    %v2523 = vpop.permute.xlu0 %2522
    %2524 = vrot.lane.b32.xlu0 %v134, 1
    %v2525 = vpop.permute.xlu0 %2524
    %2526 = vrot.lane.b32.xlu0 %v135, 1
    %v2527 = vpop.permute.xlu0 %2526
    %2528 = vrot.lane.b32.xlu0 %v136, 1
    %v2529 = vpop.permute.xlu0 %2528
    %2530 = vrot.lane.b32.xlu0 %v137, 1
    %v2531 = vpop.permute.xlu0 %2530
    %2532 = vrot.lane.b32.xlu0 %v138, 1
    %v2533 = vpop.permute.xlu0 %2532
    %2534 = vrot.lane.b32.xlu0 %v139, 1
    %v2535 = vpop.permute.xlu0 %2534
    %2536 = vrot.lane.b32.xlu0 %v140, 1
    %v2537 = vpop.permute.xlu0 %2536
    %2538 = vrot.lane.b32.xlu0 %v141, 1
    %v2539 = vpop.permute.xlu0 %2538
    %2540 = vrot.lane.b32.xlu0 %v142, 1
    %v2541 = vpop.permute.xlu0 %2540
    %2542 = vrot.lane.b32.xlu0 %v143, 1
    %v2543 = vpop.permute.xlu0 %2542
    %2544 = vrot.lane.b32.xlu0 %v144, 1
    %v2545 = vpop.permute.xlu0 %2544
    %2546 = vrot.lane.b32.xlu0 %v145, 1
    %v2547 = vpop.permute.xlu0 %2546
    %2548 = vrot.lane.b32.xlu0 %v146, 1
    %v2549 = vpop.permute.xlu0 %2548
    %2550 = vrot.lane.b32.xlu0 %v147, 1
    %v2551 = vpop.permute.xlu0 %2550
    %2552 = vrot.lane.b32.xlu0 %v148, 1
    %v2553 = vpop.permute.xlu0 %2552
    %2554 = vrot.lane.b32.xlu0 %v149, 1
    %v2555 = vpop.permute.xlu0 %2554
    %2556 = vrot.lane.b32.xlu0 %v150, 1
    %v2557 = vpop.permute.xlu0 %2556
    %2558 = vrot.lane.b32.xlu0 %v151, 1
    %v2559 = vpop.permute.xlu0 %2558
    %2560 = vrot.lane.b32.xlu0 %v152, 1
    %v2561 = vpop.permute.xlu0 %2560
    %2562 = vrot.lane.b32.xlu0 %v153, 1
    %v2563 = vpop.permute.xlu0 %2562
    %2564 = vrot.lane.b32.xlu0 %v154, 1
    %v2565 = vpop.permute.xlu0 %2564
    %2566 = vrot.lane.b32.xlu0 %v155, 1
    %v2567 = vpop.permute.xlu0 %2566
    %2568 = vrot.lane.b32.xlu0 %v156, 1
    %v2569 = vpop.permute.xlu0 %2568
    %2570 = vrot.lane.b32.xlu0 %v157, 1
    %v2571 = vpop.permute.xlu0 %2570
    %2572 = vrot.lane.b32.xlu0 %v158, 1
    %v2573 = vpop.permute.xlu0 %2572
    %2574 = vrot.lane.b32.xlu0 %v159, 1
    %v2575 = vpop.permute.xlu0 %2574
    %2576 = vrot.lane.b32.xlu0 %v160, 1
    %v2577 = vpop.permute.xlu0 %2576
    %2578 = vrot.lane.b32.xlu0 %v161, 1
    %v2579 = vpop.permute.xlu0 %2578
    %2580 = vrot.lane.b32.xlu0 %v162, 1
    %v2581 = vpop.permute.xlu0 %2580
    %2582 = vrot.lane.b32.xlu0 %v163, 1
    %v2583 = vpop.permute.xlu0 %2582
    %2584 = vrot.lane.b32.xlu0 %v164, 1
    %v2585 = vpop.permute.xlu0 %2584
    %2586 = vrot.lane.b32.xlu0 %v165, 1
    %v2587 = vpop.permute.xlu0 %2586
    %2588 = vrot.lane.b32.xlu0 %v166, 1
    %v2589 = vpop.permute.xlu0 %2588
    %v2734 = vsub.f32 %v23, %v2303
    %v2735 = vsub.f32 %v24, %v2305
    %v2736 = vsub.f32 %v25, %v2307
    %v2737 = vsub.f32 %v26, %v2309
    %v2738 = vsub.f32 %v27, %v2311
    %v2739 = vsub.f32 %v28, %v2313
    %v2740 = vsub.f32 %v29, %v2315
    %v2741 = vsub.f32 %v30, %v2317
    %v2742 = vsub.f32 %v31, %v2319
    %v2743 = vsub.f32 %v32, %v2321
    %v2744 = vsub.f32 %v33, %v2323
    %v2745 = vsub.f32 %v34, %v2325
    %v2746 = vsub.f32 %v35, %v2327
    %v2747 = vsub.f32 %v36, %v2329
    %v2748 = vsub.f32 %v37, %v2331
    %v2749 = vsub.f32 %v38, %v2333
    %v2750 = vsub.f32 %v39, %v2335
    %v2751 = vsub.f32 %v40, %v2337
    %v2752 = vsub.f32 %v41, %v2339
    %v2753 = vsub.f32 %v42, %v2341
    %v2754 = vsub.f32 %v43, %v2343
    %v2755 = vsub.f32 %v44, %v2345
    %v2756 = vsub.f32 %v45, %v2347
    %v2757 = vsub.f32 %v46, %v2349
    %v2758 = vsub.f32 %v47, %v2351
    %v2759 = vsub.f32 %v48, %v2353
    %v2760 = vsub.f32 %v49, %v2355
    %v2761 = vsub.f32 %v50, %v2357
    %v2762 = vsub.f32 %v51, %v2359
    %v2763 = vsub.f32 %v52, %v2361
    %v2764 = vsub.f32 %v53, %v2363
    %v2765 = vsub.f32 %v54, %v2365
    %v2766 = vsub.f32 %v55, %v2367
    %v2767 = vsub.f32 %v56, %v2369
    %v2768 = vsub.f32 %v57, %v2371
    %v2769 = vsub.f32 %v58, %v2373
    %v2770 = vsub.f32 %v59, %v2375
    %v2771 = vsub.f32 %v60, %v2377
    %v2772 = vsub.f32 %v61, %v2379
    %v2773 = vsub.f32 %v62, %v2381
    %v2774 = vsub.f32 %v63, %v2383
    %v2775 = vsub.f32 %v64, %v2385
    %v2776 = vsub.f32 %v65, %v2387
    %v2777 = vsub.f32 %v66, %v2389
    %v2778 = vsub.f32 %v67, %v2391
    %v2779 = vsub.f32 %v68, %v2393
    %v2780 = vsub.f32 %v69, %v2395
    %v2781 = vsub.f32 %v70, %v2397
    %v2782 = vsub.f32 %v71, %v2399
    %v2783 = vsub.f32 %v72, %v2401
    %v2784 = vsub.f32 %v73, %v2403
    %v2785 = vsub.f32 %v74, %v2405
    %v2786 = vsub.f32 %v75, %v2407
    %v2787 = vsub.f32 %v76, %v2409
    %v2788 = vsub.f32 %v77, %v2411
    %v2789 = vsub.f32 %v78, %v2413
    %v2790 = vsub.f32 %v79, %v2415
    %v2791 = vsub.f32 %v80, %v2417
    %v2792 = vsub.f32 %v81, %v2419
    %v2793 = vsub.f32 %v82, %v2421
    %v2794 = vsub.f32 %v83, %v2423
    %v2795 = vsub.f32 %v84, %v2425
    %v2796 = vsub.f32 %v85, %v2427
    %v2797 = vsub.f32 %v86, %v2429
    %v2798 = vsub.f32 %v87, %v2431
    %v2799 = vsub.f32 %v88, %v2433
    %v2800 = vsub.f32 %v89, %v2435
    %v2801 = vsub.f32 %v90, %v2437
    %v2802 = vsub.f32 %v91, %v2439
    %v2803 = vsub.f32 %v92, %v2441
    %v2804 = vsub.f32 %v93, %v2443
    %v2805 = vsub.f32 %v94, %v2445
    %v2806 = vsub.f32 %v95, %v2447
    %v2807 = vsub.f32 %v96, %v2449
    %v2808 = vsub.f32 %v97, %v2451
    %v2809 = vsub.f32 %v98, %v2453
    %v2810 = vsub.f32 %v99, %v2455
    %v2811 = vsub.f32 %v100, %v2457
    %v2812 = vsub.f32 %v101, %v2459
    %v2813 = vsub.f32 %v102, %v2461
    %v2814 = vsub.f32 %v103, %v2463
    %v2815 = vsub.f32 %v104, %v2465
    %v2816 = vsub.f32 %v105, %v2467
    %v2817 = vsub.f32 %v106, %v2469
    %v2818 = vsub.f32 %v107, %v2471
    %v2819 = vsub.f32 %v108, %v2473
    %v2820 = vsub.f32 %v109, %v2475
    %v2821 = vsub.f32 %v110, %v2477
    %v2822 = vsub.f32 %v111, %v2479
    %v2823 = vsub.f32 %v112, %v2481
    %v2824 = vsub.f32 %v113, %v2483
    %v2825 = vsub.f32 %v114, %v2485
    %v2826 = vsub.f32 %v115, %v2487
    %v2827 = vsub.f32 %v116, %v2489
    %v2828 = vsub.f32 %v117, %v2491
    %v2829 = vsub.f32 %v118, %v2493
    %v2830 = vsub.f32 %v119, %v2495
    %v2831 = vsub.f32 %v120, %v2497
    %v2832 = vsub.f32 %v121, %v2499
    %v2833 = vsub.f32 %v122, %v2501
    %v2834 = vsub.f32 %v123, %v2503
    %v2835 = vsub.f32 %v124, %v2505
    %v2836 = vsub.f32 %v125, %v2507
    %v2837 = vsub.f32 %v126, %v2509
    %v2838 = vsub.f32 %v127, %v2511
    %v2839 = vsub.f32 %v128, %v2513
    %v2840 = vsub.f32 %v129, %v2515
    %v2841 = vsub.f32 %v130, %v2517
    %v2842 = vsub.f32 %v131, %v2519
    %v2843 = vsub.f32 %v132, %v2521
    %v2844 = vsub.f32 %v133, %v2523
    %v2845 = vsub.f32 %v134, %v2525
    %v2846 = vsub.f32 %v135, %v2527
    %v2847 = vsub.f32 %v136, %v2529
    %v2848 = vsub.f32 %v137, %v2531
    %v2849 = vsub.f32 %v138, %v2533
    %v2850 = vsub.f32 %v139, %v2535
    %v2851 = vsub.f32 %v140, %v2537
    %v2852 = vsub.f32 %v141, %v2539
    %v2853 = vsub.f32 %v142, %v2541
    %v2854 = vsub.f32 %v143, %v2543
    %v2855 = vsub.f32 %v144, %v2545
    %v2856 = vsub.f32 %v145, %v2547
    %v2857 = vsub.f32 %v146, %v2549
    %v2858 = vsub.f32 %v147, %v2551
    %v2859 = vsub.f32 %v148, %v2553
    %v2860 = vsub.f32 %v149, %v2555
    %v2861 = vsub.f32 %v150, %v2557
    %v2862 = vsub.f32 %v151, %v2559
    %v2863 = vsub.f32 %v152, %v2561
    %v2864 = vsub.f32 %v153, %v2563
    %v2865 = vsub.f32 %v154, %v2565
    %v2866 = vsub.f32 %v155, %v2567
    %v2867 = vsub.f32 %v156, %v2569
    %v2868 = vsub.f32 %v157, %v2571
    %v2869 = vsub.f32 %v158, %v2573
    %v2870 = vsub.f32 %v159, %v2575
    %v2871 = vsub.f32 %v160, %v2577
    %v2872 = vsub.f32 %v161, %v2579
    %v2873 = vsub.f32 %v162, %v2581
    %v2874 = vsub.f32 %v163, %v2583
    %v2875 = vsub.f32 %v164, %v2585
    %v2876 = vsub.f32 %v165, %v2587
    %v2877 = vsub.f32 %v166, %v2589
    %v2878 = vand.u32 2147483647, %v2734
    %v2879 = vand.u32 2147483647, %v2735
    %v2880 = vand.u32 2147483647, %v2736
    %v2881 = vand.u32 2147483647, %v2737
    %v2882 = vand.u32 2147483647, %v2738
    %v2883 = vand.u32 2147483647, %v2739
    %v2884 = vand.u32 2147483647, %v2740
    %v2885 = vand.u32 2147483647, %v2741
    %v2886 = vand.u32 2147483647, %v2742
    %v2887 = vand.u32 2147483647, %v2743
    %v2888 = vand.u32 2147483647, %v2744
    %v2889 = vand.u32 2147483647, %v2745
    %v2890 = vand.u32 2147483647, %v2746
    %v2891 = vand.u32 2147483647, %v2747
    %v2892 = vand.u32 2147483647, %v2748
    %v2893 = vand.u32 2147483647, %v2749
    %v2894 = vand.u32 2147483647, %v2750
    %v2895 = vand.u32 2147483647, %v2751
    %v2896 = vand.u32 2147483647, %v2752
    %v2897 = vand.u32 2147483647, %v2753
    %v2898 = vand.u32 2147483647, %v2754
    %v2899 = vand.u32 2147483647, %v2755
    %v2900 = vand.u32 2147483647, %v2756
    %v2901 = vand.u32 2147483647, %v2757
    %v2902 = vand.u32 2147483647, %v2758
    %v2903 = vand.u32 2147483647, %v2759
    %v2904 = vand.u32 2147483647, %v2760
    %v2905 = vand.u32 2147483647, %v2761
    %v2906 = vand.u32 2147483647, %v2762
    %v2907 = vand.u32 2147483647, %v2763
    %v2908 = vand.u32 2147483647, %v2764
    %v2909 = vand.u32 2147483647, %v2765
    %v2910 = vand.u32 2147483647, %v2766
    %v2911 = vand.u32 2147483647, %v2767
    %v2912 = vand.u32 2147483647, %v2768
    %v2913 = vand.u32 2147483647, %v2769
    %v2914 = vand.u32 2147483647, %v2770
    %v2915 = vand.u32 2147483647, %v2771
    %v2916 = vand.u32 2147483647, %v2772
    %v2917 = vand.u32 2147483647, %v2773
    %v2918 = vand.u32 2147483647, %v2774
    %v2919 = vand.u32 2147483647, %v2775
    %v2920 = vand.u32 2147483647, %v2776
    %v2921 = vand.u32 2147483647, %v2777
    %v2922 = vand.u32 2147483647, %v2778
    %v2923 = vand.u32 2147483647, %v2779
    %v2924 = vand.u32 2147483647, %v2780
    %v2925 = vand.u32 2147483647, %v2781
    %v2926 = vand.u32 2147483647, %v2782
    %v2927 = vand.u32 2147483647, %v2783
    %v2928 = vand.u32 2147483647, %v2784
    %v2929 = vand.u32 2147483647, %v2785
    %v2930 = vand.u32 2147483647, %v2786
    %v2931 = vand.u32 2147483647, %v2787
    %v2932 = vand.u32 2147483647, %v2788
    %v2933 = vand.u32 2147483647, %v2789
    %v2934 = vand.u32 2147483647, %v2790
    %v2935 = vand.u32 2147483647, %v2791
    %v2936 = vand.u32 2147483647, %v2792
    %v2937 = vand.u32 2147483647, %v2793
    %v2938 = vand.u32 2147483647, %v2794
    %v2939 = vand.u32 2147483647, %v2795
    %v2940 = vand.u32 2147483647, %v2796
    %v2941 = vand.u32 2147483647, %v2797
    %v2942 = vand.u32 2147483647, %v2798
    %v2943 = vand.u32 2147483647, %v2799
    %v2944 = vand.u32 2147483647, %v2800
    %v2945 = vand.u32 2147483647, %v2801
    %v2946 = vand.u32 2147483647, %v2802
    %v2947 = vand.u32 2147483647, %v2803
    %v2948 = vand.u32 2147483647, %v2804
    %v2949 = vand.u32 2147483647, %v2805
    %v2950 = vand.u32 2147483647, %v2806
    %v2951 = vand.u32 2147483647, %v2807
    %v2952 = vand.u32 2147483647, %v2808
    %v2953 = vand.u32 2147483647, %v2809
    %v2954 = vand.u32 2147483647, %v2810
    %v2955 = vand.u32 2147483647, %v2811
    %v2956 = vand.u32 2147483647, %v2812
    %v2957 = vand.u32 2147483647, %v2813
    %v2958 = vand.u32 2147483647, %v2814
    %v2959 = vand.u32 2147483647, %v2815
    %v2960 = vand.u32 2147483647, %v2816
    %v2961 = vand.u32 2147483647, %v2817
    %v2962 = vand.u32 2147483647, %v2818
    %v2963 = vand.u32 2147483647, %v2819
    %v2964 = vand.u32 2147483647, %v2820
    %v2965 = vand.u32 2147483647, %v2821
    %v2966 = vand.u32 2147483647, %v2822
    %v2967 = vand.u32 2147483647, %v2823
    %v2968 = vand.u32 2147483647, %v2824
    %v2969 = vand.u32 2147483647, %v2825
    %v2970 = vand.u32 2147483647, %v2826
    %v2971 = vand.u32 2147483647, %v2827
    %v2972 = vand.u32 2147483647, %v2828
    %v2973 = vand.u32 2147483647, %v2829
    %v2974 = vand.u32 2147483647, %v2830
    %v2975 = vand.u32 2147483647, %v2831
    %v2976 = vand.u32 2147483647, %v2832
    %v2977 = vand.u32 2147483647, %v2833
    %v2978 = vand.u32 2147483647, %v2834
    %v2979 = vand.u32 2147483647, %v2835
    %v2980 = vand.u32 2147483647, %v2836
    %v2981 = vand.u32 2147483647, %v2837
    %v2982 = vand.u32 2147483647, %v2838
    %v2983 = vand.u32 2147483647, %v2839
    %v2984 = vand.u32 2147483647, %v2840
    %v2985 = vand.u32 2147483647, %v2841
    %v2986 = vand.u32 2147483647, %v2842
    %v2987 = vand.u32 2147483647, %v2843
    %v2988 = vand.u32 2147483647, %v2844
    %v2989 = vand.u32 2147483647, %v2845
    %v2990 = vand.u32 2147483647, %v2846
    %v2991 = vand.u32 2147483647, %v2847
    %v2992 = vand.u32 2147483647, %v2848
    %v2993 = vand.u32 2147483647, %v2849
    %v2994 = vand.u32 2147483647, %v2850
    %v2995 = vand.u32 2147483647, %v2851
    %v2996 = vand.u32 2147483647, %v2852
    %v2997 = vand.u32 2147483647, %v2853
    %v2998 = vand.u32 2147483647, %v2854
    %v2999 = vand.u32 2147483647, %v2855
    %v3000 = vand.u32 2147483647, %v2856
    %v3001 = vand.u32 2147483647, %v2857
    %v3002 = vand.u32 2147483647, %v2858
    %v3003 = vand.u32 2147483647, %v2859
    %v3004 = vand.u32 2147483647, %v2860
    %v3005 = vand.u32 2147483647, %v2861
    %v3006 = vand.u32 2147483647, %v2862
    %v3007 = vand.u32 2147483647, %v2863
    %v3008 = vand.u32 2147483647, %v2864
    %v3009 = vand.u32 2147483647, %v2865
    %v3010 = vand.u32 2147483647, %v2866
    %v3011 = vand.u32 2147483647, %v2867
    %v3012 = vand.u32 2147483647, %v2868
    %v3013 = vand.u32 2147483647, %v2869
    %v3014 = vand.u32 2147483647, %v2870
    %v3015 = vand.u32 2147483647, %v2871
    %v3016 = vand.u32 2147483647, %v2872
    %v3017 = vand.u32 2147483647, %v2873
    %v3018 = vand.u32 2147483647, %v2874
    %v3019 = vand.u32 2147483647, %v2875
    %v3020 = vand.u32 2147483647, %v2876
    %v3021 = vand.u32 2147483647, %v2877
    %3166 = vrot.lane.b32.xlu0 %v2878, 127
    %v3167 = vpop.permute.xlu0 %3166
    %3168 = vrot.lane.b32.xlu0 %v2879, 127
    %v3169 = vpop.permute.xlu0 %3168
    %3170 = vrot.lane.b32.xlu0 %v2880, 127
    %v3171 = vpop.permute.xlu0 %3170
    %3172 = vrot.lane.b32.xlu0 %v2881, 127
    %v3173 = vpop.permute.xlu0 %3172
    %3174 = vrot.lane.b32.xlu0 %v2882, 127
    %v3175 = vpop.permute.xlu0 %3174
    %3176 = vrot.lane.b32.xlu0 %v2883, 127
    %v3177 = vpop.permute.xlu0 %3176
    %3178 = vrot.lane.b32.xlu0 %v2884, 127
    %v3179 = vpop.permute.xlu0 %3178
    %3180 = vrot.lane.b32.xlu0 %v2885, 127
    %v3181 = vpop.permute.xlu0 %3180
    %3182 = vrot.lane.b32.xlu0 %v2886, 127
    %v3183 = vpop.permute.xlu0 %3182
    %3184 = vrot.lane.b32.xlu0 %v2887, 127
    %v3185 = vpop.permute.xlu0 %3184
    %3186 = vrot.lane.b32.xlu0 %v2888, 127
    %v3187 = vpop.permute.xlu0 %3186
    %3188 = vrot.lane.b32.xlu0 %v2889, 127
    %v3189 = vpop.permute.xlu0 %3188
    %3190 = vrot.lane.b32.xlu0 %v2890, 127
    %v3191 = vpop.permute.xlu0 %3190
    %3192 = vrot.lane.b32.xlu0 %v2891, 127
    %v3193 = vpop.permute.xlu0 %3192
    %3194 = vrot.lane.b32.xlu0 %v2892, 127
    %v3195 = vpop.permute.xlu0 %3194
    %3196 = vrot.lane.b32.xlu0 %v2893, 127
    %v3197 = vpop.permute.xlu0 %3196
    %3198 = vrot.lane.b32.xlu0 %v2894, 127
    %v3199 = vpop.permute.xlu0 %3198
    %3200 = vrot.lane.b32.xlu0 %v2895, 127
    %v3201 = vpop.permute.xlu0 %3200
    %3202 = vrot.lane.b32.xlu0 %v2896, 127
    %v3203 = vpop.permute.xlu0 %3202
    %3204 = vrot.lane.b32.xlu0 %v2897, 127
    %v3205 = vpop.permute.xlu0 %3204
    %3206 = vrot.lane.b32.xlu0 %v2898, 127
    %v3207 = vpop.permute.xlu0 %3206
    %3208 = vrot.lane.b32.xlu0 %v2899, 127
    %v3209 = vpop.permute.xlu0 %3208
    %3210 = vrot.lane.b32.xlu0 %v2900, 127
    %v3211 = vpop.permute.xlu0 %3210
    %3212 = vrot.lane.b32.xlu0 %v2901, 127
    %v3213 = vpop.permute.xlu0 %3212
    %3214 = vrot.lane.b32.xlu0 %v2902, 127
    %v3215 = vpop.permute.xlu0 %3214
    %3216 = vrot.lane.b32.xlu0 %v2903, 127
    %v3217 = vpop.permute.xlu0 %3216
    %3218 = vrot.lane.b32.xlu0 %v2904, 127
    %v3219 = vpop.permute.xlu0 %3218
    %3220 = vrot.lane.b32.xlu0 %v2905, 127
    %v3221 = vpop.permute.xlu0 %3220
    %3222 = vrot.lane.b32.xlu0 %v2906, 127
    %v3223 = vpop.permute.xlu0 %3222
    %3224 = vrot.lane.b32.xlu0 %v2907, 127
    %v3225 = vpop.permute.xlu0 %3224
    %3226 = vrot.lane.b32.xlu0 %v2908, 127
    %v3227 = vpop.permute.xlu0 %3226
    %3228 = vrot.lane.b32.xlu0 %v2909, 127
    %v3229 = vpop.permute.xlu0 %3228
    %3230 = vrot.lane.b32.xlu0 %v2910, 127
    %v3231 = vpop.permute.xlu0 %3230
    %3232 = vrot.lane.b32.xlu0 %v2911, 127
    %v3233 = vpop.permute.xlu0 %3232
    %3234 = vrot.lane.b32.xlu0 %v2912, 127
    %v3235 = vpop.permute.xlu0 %3234
    %3236 = vrot.lane.b32.xlu0 %v2913, 127
    %v3237 = vpop.permute.xlu0 %3236
    %3238 = vrot.lane.b32.xlu0 %v2914, 127
    %v3239 = vpop.permute.xlu0 %3238
    %3240 = vrot.lane.b32.xlu0 %v2915, 127
    %v3241 = vpop.permute.xlu0 %3240
    %3242 = vrot.lane.b32.xlu0 %v2916, 127
    %v3243 = vpop.permute.xlu0 %3242
    %3244 = vrot.lane.b32.xlu0 %v2917, 127
    %v3245 = vpop.permute.xlu0 %3244
    %3246 = vrot.lane.b32.xlu0 %v2918, 127
    %v3247 = vpop.permute.xlu0 %3246
    %3248 = vrot.lane.b32.xlu0 %v2919, 127
    %v3249 = vpop.permute.xlu0 %3248
    %3250 = vrot.lane.b32.xlu0 %v2920, 127
    %v3251 = vpop.permute.xlu0 %3250
    %3252 = vrot.lane.b32.xlu0 %v2921, 127
    %v3253 = vpop.permute.xlu0 %3252
    %3254 = vrot.lane.b32.xlu0 %v2922, 127
    %v3255 = vpop.permute.xlu0 %3254
    %3256 = vrot.lane.b32.xlu0 %v2923, 127
    %v3257 = vpop.permute.xlu0 %3256
    %3258 = vrot.lane.b32.xlu0 %v2924, 127
    %v3259 = vpop.permute.xlu0 %3258
    %3260 = vrot.lane.b32.xlu0 %v2925, 127
    %v3261 = vpop.permute.xlu0 %3260
    %3262 = vrot.lane.b32.xlu0 %v2926, 127
    %v3263 = vpop.permute.xlu0 %3262
    %3264 = vrot.lane.b32.xlu0 %v2927, 127
    %v3265 = vpop.permute.xlu0 %3264
    %3266 = vrot.lane.b32.xlu0 %v2928, 127
    %v3267 = vpop.permute.xlu0 %3266
    %3268 = vrot.lane.b32.xlu0 %v2929, 127
    %v3269 = vpop.permute.xlu0 %3268
    %3270 = vrot.lane.b32.xlu0 %v2930, 127
    %v3271 = vpop.permute.xlu0 %3270
    %3272 = vrot.lane.b32.xlu0 %v2931, 127
    %v3273 = vpop.permute.xlu0 %3272
    %3274 = vrot.lane.b32.xlu0 %v2932, 127
    %v3275 = vpop.permute.xlu0 %3274
    %3276 = vrot.lane.b32.xlu0 %v2933, 127
    %v3277 = vpop.permute.xlu0 %3276
    %3278 = vrot.lane.b32.xlu0 %v2934, 127
    %v3279 = vpop.permute.xlu0 %3278
    %3280 = vrot.lane.b32.xlu0 %v2935, 127
    %v3281 = vpop.permute.xlu0 %3280
    %3282 = vrot.lane.b32.xlu0 %v2936, 127
    %v3283 = vpop.permute.xlu0 %3282
    %3284 = vrot.lane.b32.xlu0 %v2937, 127
    %v3285 = vpop.permute.xlu0 %3284
    %3286 = vrot.lane.b32.xlu0 %v2938, 127
    %v3287 = vpop.permute.xlu0 %3286
    %3288 = vrot.lane.b32.xlu0 %v2939, 127
    %v3289 = vpop.permute.xlu0 %3288
    %3290 = vrot.lane.b32.xlu0 %v2940, 127
    %v3291 = vpop.permute.xlu0 %3290
    %3292 = vrot.lane.b32.xlu0 %v2941, 127
    %v3293 = vpop.permute.xlu0 %3292
    %3294 = vrot.lane.b32.xlu0 %v2942, 127
    %v3295 = vpop.permute.xlu0 %3294
    %3296 = vrot.lane.b32.xlu0 %v2943, 127
    %v3297 = vpop.permute.xlu0 %3296
    %3298 = vrot.lane.b32.xlu0 %v2944, 127
    %v3299 = vpop.permute.xlu0 %3298
    %3300 = vrot.lane.b32.xlu0 %v2945, 127
    %v3301 = vpop.permute.xlu0 %3300
    %3302 = vrot.lane.b32.xlu0 %v2946, 127
    %v3303 = vpop.permute.xlu0 %3302
    %3304 = vrot.lane.b32.xlu0 %v2947, 127
    %v3305 = vpop.permute.xlu0 %3304
    %3306 = vrot.lane.b32.xlu0 %v2948, 127
    %v3307 = vpop.permute.xlu0 %3306
    %3308 = vrot.lane.b32.xlu0 %v2949, 127
    %v3309 = vpop.permute.xlu0 %3308
    %3310 = vrot.lane.b32.xlu0 %v2950, 127
    %v3311 = vpop.permute.xlu0 %3310
    %3312 = vrot.lane.b32.xlu0 %v2951, 127
    %v3313 = vpop.permute.xlu0 %3312
    %3314 = vrot.lane.b32.xlu0 %v2952, 127
    %v3315 = vpop.permute.xlu0 %3314
    %3316 = vrot.lane.b32.xlu0 %v2953, 127
    %v3317 = vpop.permute.xlu0 %3316
    %3318 = vrot.lane.b32.xlu0 %v2954, 127
    %v3319 = vpop.permute.xlu0 %3318
    %3320 = vrot.lane.b32.xlu0 %v2955, 127
    %v3321 = vpop.permute.xlu0 %3320
    %3322 = vrot.lane.b32.xlu0 %v2956, 127
    %v3323 = vpop.permute.xlu0 %3322
    %3324 = vrot.lane.b32.xlu0 %v2957, 127
    %v3325 = vpop.permute.xlu0 %3324
    %3326 = vrot.lane.b32.xlu0 %v2958, 127
    %v3327 = vpop.permute.xlu0 %3326
    %3328 = vrot.lane.b32.xlu0 %v2959, 127
    %v3329 = vpop.permute.xlu0 %3328
    %3330 = vrot.lane.b32.xlu0 %v2960, 127
    %v3331 = vpop.permute.xlu0 %3330
    %3332 = vrot.lane.b32.xlu0 %v2961, 127
    %v3333 = vpop.permute.xlu0 %3332
    %3334 = vrot.lane.b32.xlu0 %v2962, 127
    %v3335 = vpop.permute.xlu0 %3334
    %3336 = vrot.lane.b32.xlu0 %v2963, 127
    %v3337 = vpop.permute.xlu0 %3336
    %3338 = vrot.lane.b32.xlu0 %v2964, 127
    %v3339 = vpop.permute.xlu0 %3338
    %3340 = vrot.lane.b32.xlu0 %v2965, 127
    %v3341 = vpop.permute.xlu0 %3340
    %3342 = vrot.lane.b32.xlu0 %v2966, 127
    %v3343 = vpop.permute.xlu0 %3342
    %3344 = vrot.lane.b32.xlu0 %v2967, 127
    %v3345 = vpop.permute.xlu0 %3344
    %3346 = vrot.lane.b32.xlu0 %v2968, 127
    %v3347 = vpop.permute.xlu0 %3346
    %3348 = vrot.lane.b32.xlu0 %v2969, 127
    %v3349 = vpop.permute.xlu0 %3348
    %3350 = vrot.lane.b32.xlu0 %v2970, 127
    %v3351 = vpop.permute.xlu0 %3350
    %3352 = vrot.lane.b32.xlu0 %v2971, 127
    %v3353 = vpop.permute.xlu0 %3352
    %3354 = vrot.lane.b32.xlu0 %v2972, 127
    %v3355 = vpop.permute.xlu0 %3354
    %3356 = vrot.lane.b32.xlu0 %v2973, 127
    %v3357 = vpop.permute.xlu0 %3356
    %3358 = vrot.lane.b32.xlu0 %v2974, 127
    %v3359 = vpop.permute.xlu0 %3358
    %3360 = vrot.lane.b32.xlu0 %v2975, 127
    %v3361 = vpop.permute.xlu0 %3360
    %3362 = vrot.lane.b32.xlu0 %v2976, 127
    %v3363 = vpop.permute.xlu0 %3362
    %3364 = vrot.lane.b32.xlu0 %v2977, 127
    %v3365 = vpop.permute.xlu0 %3364
    %3366 = vrot.lane.b32.xlu0 %v2978, 127
    %v3367 = vpop.permute.xlu0 %3366
    %3368 = vrot.lane.b32.xlu0 %v2979, 127
    %v3369 = vpop.permute.xlu0 %3368
    %3370 = vrot.lane.b32.xlu0 %v2980, 127
    %v3371 = vpop.permute.xlu0 %3370
    %3372 = vrot.lane.b32.xlu0 %v2981, 127
    %v3373 = vpop.permute.xlu0 %3372
    %3374 = vrot.lane.b32.xlu0 %v2982, 127
    %v3375 = vpop.permute.xlu0 %3374
    %3376 = vrot.lane.b32.xlu0 %v2983, 127
    %v3377 = vpop.permute.xlu0 %3376
    %3378 = vrot.lane.b32.xlu0 %v2984, 127
    %v3379 = vpop.permute.xlu0 %3378
    %3380 = vrot.lane.b32.xlu0 %v2985, 127
    %v3381 = vpop.permute.xlu0 %3380
    %3382 = vrot.lane.b32.xlu0 %v2986, 127
    %v3383 = vpop.permute.xlu0 %3382
    %3384 = vrot.lane.b32.xlu0 %v2987, 127
    %v3385 = vpop.permute.xlu0 %3384
    %3386 = vrot.lane.b32.xlu0 %v2988, 127
    %v3387 = vpop.permute.xlu0 %3386
    %3388 = vrot.lane.b32.xlu0 %v2989, 127
    %v3389 = vpop.permute.xlu0 %3388
    %3390 = vrot.lane.b32.xlu0 %v2990, 127
    %v3391 = vpop.permute.xlu0 %3390
    %3392 = vrot.lane.b32.xlu0 %v2991, 127
    %v3393 = vpop.permute.xlu0 %3392
    %3394 = vrot.lane.b32.xlu0 %v2992, 127
    %v3395 = vpop.permute.xlu0 %3394
    %3396 = vrot.lane.b32.xlu0 %v2993, 127
    %v3397 = vpop.permute.xlu0 %3396
    %3398 = vrot.lane.b32.xlu0 %v2994, 127
    %v3399 = vpop.permute.xlu0 %3398
    %3400 = vrot.lane.b32.xlu0 %v2995, 127
    %v3401 = vpop.permute.xlu0 %3400
    %3402 = vrot.lane.b32.xlu0 %v2996, 127
    %v3403 = vpop.permute.xlu0 %3402
    %3404 = vrot.lane.b32.xlu0 %v2997, 127
    %v3405 = vpop.permute.xlu0 %3404
    %3406 = vrot.lane.b32.xlu0 %v2998, 127
    %v3407 = vpop.permute.xlu0 %3406
    %3408 = vrot.lane.b32.xlu0 %v2999, 127
    %v3409 = vpop.permute.xlu0 %3408
    %3410 = vrot.lane.b32.xlu0 %v3000, 127
    %v3411 = vpop.permute.xlu0 %3410
    %3412 = vrot.lane.b32.xlu0 %v3001, 127
    %v3413 = vpop.permute.xlu0 %3412
    %3414 = vrot.lane.b32.xlu0 %v3002, 127
    %v3415 = vpop.permute.xlu0 %3414
    %3416 = vrot.lane.b32.xlu0 %v3003, 127
    %v3417 = vpop.permute.xlu0 %3416
    %3418 = vrot.lane.b32.xlu0 %v3004, 127
    %v3419 = vpop.permute.xlu0 %3418
    %3420 = vrot.lane.b32.xlu0 %v3005, 127
    %v3421 = vpop.permute.xlu0 %3420
    %3422 = vrot.lane.b32.xlu0 %v3006, 127
    %v3423 = vpop.permute.xlu0 %3422
    %3424 = vrot.lane.b32.xlu0 %v3007, 127
    %v3425 = vpop.permute.xlu0 %3424
    %3426 = vrot.lane.b32.xlu0 %v3008, 127
    %v3427 = vpop.permute.xlu0 %3426
    %3428 = vrot.lane.b32.xlu0 %v3009, 127
    %v3429 = vpop.permute.xlu0 %3428
    %3430 = vrot.lane.b32.xlu0 %v3010, 127
    %v3431 = vpop.permute.xlu0 %3430
    %3432 = vrot.lane.b32.xlu0 %v3011, 127
    %v3433 = vpop.permute.xlu0 %3432
    %3434 = vrot.lane.b32.xlu0 %v3012, 127
    %v3435 = vpop.permute.xlu0 %3434
    %3436 = vrot.lane.b32.xlu0 %v3013, 127
    %v3437 = vpop.permute.xlu0 %3436
    %3438 = vrot.lane.b32.xlu0 %v3014, 127
    %v3439 = vpop.permute.xlu0 %3438
    %3440 = vrot.lane.b32.xlu0 %v3015, 127
    %v3441 = vpop.permute.xlu0 %3440
    %3442 = vrot.lane.b32.xlu0 %v3016, 127
    %v3443 = vpop.permute.xlu0 %3442
    %3444 = vrot.lane.b32.xlu0 %v3017, 127
    %v3445 = vpop.permute.xlu0 %3444
    %3446 = vrot.lane.b32.xlu0 %v3018, 127
    %v3447 = vpop.permute.xlu0 %3446
    %3448 = vrot.lane.b32.xlu0 %v3019, 127
    %v3449 = vpop.permute.xlu0 %3448
    %3450 = vrot.lane.b32.xlu0 %v3020, 127
    %v3451 = vpop.permute.xlu0 %3450
    %3452 = vrot.lane.b32.xlu0 %v3021, 127
    %v3453 = vpop.permute.xlu0 %3452
    %vm3598 = vcmask 121856
    %v3599 = vsel %vm3598, %v3167, 0.0
    %v3600 = vsel %vm3598, %v3169, 0.0
    %v3601 = vadd.f32 %v3599, %v3600
    %v3602 = vsel %vm3598, %v3171, 0.0
    %v3603 = vadd.f32 %v3601, %v3602
    %v3604 = vsel %vm3598, %v3173, 0.0
    %v3605 = vadd.f32 %v3603, %v3604
    %v3606 = vsel %vm3598, %v3175, 0.0
    %v3607 = vadd.f32 %v3605, %v3606
    %v3608 = vsel %vm3598, %v3177, 0.0
    %v3609 = vadd.f32 %v3607, %v3608
    %v3610 = vsel %vm3598, %v3179, 0.0
    %v3611 = vadd.f32 %v3609, %v3610
    %v3612 = vsel %vm3598, %v3181, 0.0
    %v3613 = vadd.f32 %v3611, %v3612
    %v3614 = vsel %vm3598, %v3183, 0.0
    %v3615 = vadd.f32 %v3613, %v3614
    %v3616 = vsel %vm3598, %v3185, 0.0
    %v3617 = vadd.f32 %v3615, %v3616
    %v3618 = vsel %vm3598, %v3187, 0.0
    %v3619 = vadd.f32 %v3617, %v3618
    %v3620 = vsel %vm3598, %v3189, 0.0
    %v3621 = vadd.f32 %v3619, %v3620
    %v3622 = vsel %vm3598, %v3191, 0.0
    %v3623 = vadd.f32 %v3621, %v3622
    %v3624 = vsel %vm3598, %v3193, 0.0
    %v3625 = vadd.f32 %v3623, %v3624
    %v3626 = vsel %vm3598, %v3195, 0.0
    %v3627 = vadd.f32 %v3625, %v3626
    %v3628 = vsel %vm3598, %v3197, 0.0
    %v3629 = vadd.f32 %v3627, %v3628
    %v3630 = vsel %vm3598, %v3199, 0.0
    %v3631 = vadd.f32 %v3629, %v3630
    %v3632 = vsel %vm3598, %v3201, 0.0
    %v3633 = vadd.f32 %v3631, %v3632
    %v3634 = vsel %vm3598, %v3203, 0.0
    %v3635 = vadd.f32 %v3633, %v3634
    %v3636 = vsel %vm3598, %v3205, 0.0
    %v3637 = vadd.f32 %v3635, %v3636
    %v3638 = vsel %vm3598, %v3207, 0.0
    %v3639 = vadd.f32 %v3637, %v3638
    %v3640 = vsel %vm3598, %v3209, 0.0
    %v3641 = vadd.f32 %v3639, %v3640
    %v3642 = vsel %vm3598, %v3211, 0.0
    %v3643 = vadd.f32 %v3641, %v3642
    %v3644 = vsel %vm3598, %v3213, 0.0
    %v3645 = vadd.f32 %v3643, %v3644
    %v3646 = vsel %vm3598, %v3215, 0.0
    %v3647 = vadd.f32 %v3645, %v3646
    %v3648 = vsel %vm3598, %v3217, 0.0
    %v3649 = vadd.f32 %v3647, %v3648
    %v3650 = vsel %vm3598, %v3219, 0.0
    %v3651 = vadd.f32 %v3649, %v3650
    %v3652 = vsel %vm3598, %v3221, 0.0
    %v3653 = vadd.f32 %v3651, %v3652
    %v3654 = vsel %vm3598, %v3223, 0.0
    %v3655 = vadd.f32 %v3653, %v3654
    %v3656 = vsel %vm3598, %v3225, 0.0
    %v3657 = vadd.f32 %v3655, %v3656
    %v3658 = vsel %vm3598, %v3227, 0.0
    %v3659 = vadd.f32 %v3657, %v3658
    %v3660 = vsel %vm3598, %v3229, 0.0
    %v3661 = vadd.f32 %v3659, %v3660
    %v3662 = vsel %vm3598, %v3231, 0.0
    %v3663 = vadd.f32 %v3661, %v3662
    %v3664 = vsel %vm3598, %v3233, 0.0
    %v3665 = vadd.f32 %v3663, %v3664
    %v3666 = vsel %vm3598, %v3235, 0.0
    %v3667 = vadd.f32 %v3665, %v3666
    %v3668 = vsel %vm3598, %v3237, 0.0
    %v3669 = vadd.f32 %v3667, %v3668
    %v3670 = vsel %vm3598, %v3239, 0.0
    %v3671 = vadd.f32 %v3669, %v3670
    %v3672 = vsel %vm3598, %v3241, 0.0
    %v3673 = vadd.f32 %v3671, %v3672
    %v3674 = vsel %vm3598, %v3243, 0.0
    %v3675 = vadd.f32 %v3673, %v3674
    %v3676 = vsel %vm3598, %v3245, 0.0
    %v3677 = vadd.f32 %v3675, %v3676
    %v3678 = vsel %vm3598, %v3247, 0.0
    %v3679 = vadd.f32 %v3677, %v3678
    %v3680 = vsel %vm3598, %v3249, 0.0
    %v3681 = vadd.f32 %v3679, %v3680
    %v3682 = vsel %vm3598, %v3251, 0.0
    %v3683 = vadd.f32 %v3681, %v3682
    %v3684 = vsel %vm3598, %v3253, 0.0
    %v3685 = vadd.f32 %v3683, %v3684
    %v3686 = vsel %vm3598, %v3255, 0.0
    %v3687 = vadd.f32 %v3685, %v3686
    %v3688 = vsel %vm3598, %v3257, 0.0
    %v3689 = vadd.f32 %v3687, %v3688
    %v3690 = vsel %vm3598, %v3259, 0.0
    %v3691 = vadd.f32 %v3689, %v3690
    %v3692 = vsel %vm3598, %v3261, 0.0
    %v3693 = vadd.f32 %v3691, %v3692
    %v3694 = vsel %vm3598, %v3263, 0.0
    %v3695 = vadd.f32 %v3693, %v3694
    %v3696 = vsel %vm3598, %v3265, 0.0
    %v3697 = vadd.f32 %v3695, %v3696
    %v3698 = vsel %vm3598, %v3267, 0.0
    %v3699 = vadd.f32 %v3697, %v3698
    %v3700 = vsel %vm3598, %v3269, 0.0
    %v3701 = vadd.f32 %v3699, %v3700
    %v3702 = vsel %vm3598, %v3271, 0.0
    %v3703 = vadd.f32 %v3701, %v3702
    %v3704 = vsel %vm3598, %v3273, 0.0
    %v3705 = vadd.f32 %v3703, %v3704
    %v3706 = vsel %vm3598, %v3275, 0.0
    %v3707 = vadd.f32 %v3705, %v3706
    %v3708 = vsel %vm3598, %v3277, 0.0
    %v3709 = vadd.f32 %v3707, %v3708
    %v3710 = vsel %vm3598, %v3279, 0.0
    %v3711 = vadd.f32 %v3709, %v3710
    %v3712 = vsel %vm3598, %v3281, 0.0
    %v3713 = vadd.f32 %v3711, %v3712
    %v3714 = vsel %vm3598, %v3283, 0.0
    %v3715 = vadd.f32 %v3713, %v3714
    %v3716 = vsel %vm3598, %v3285, 0.0
    %v3717 = vadd.f32 %v3715, %v3716
    %v3718 = vsel %vm3598, %v3287, 0.0
    %v3719 = vadd.f32 %v3717, %v3718
    %v3720 = vsel %vm3598, %v3289, 0.0
    %v3721 = vadd.f32 %v3719, %v3720
    %v3722 = vsel %vm3598, %v3291, 0.0
    %v3723 = vadd.f32 %v3721, %v3722
    %v3724 = vsel %vm3598, %v3293, 0.0
    %v3725 = vadd.f32 %v3723, %v3724
    %v3726 = vsel %vm3598, %v3295, 0.0
    %v3727 = vadd.f32 %v3725, %v3726
    %v3728 = vsel %vm3598, %v3297, 0.0
    %v3729 = vadd.f32 %v3727, %v3728
    %v3730 = vsel %vm3598, %v3299, 0.0
    %v3731 = vadd.f32 %v3729, %v3730
    %v3732 = vsel %vm3598, %v3301, 0.0
    %v3733 = vadd.f32 %v3731, %v3732
    %v3734 = vsel %vm3598, %v3303, 0.0
    %v3735 = vadd.f32 %v3733, %v3734
    %v3736 = vsel %vm3598, %v3305, 0.0
    %v3737 = vadd.f32 %v3735, %v3736
    %v3738 = vsel %vm3598, %v3307, 0.0
    %v3739 = vadd.f32 %v3737, %v3738
    %v3740 = vsel %vm3598, %v3309, 0.0
    %v3741 = vadd.f32 %v3739, %v3740
    %v3742 = vsel %vm3598, %v3311, 0.0
    %v3743 = vadd.f32 %v3741, %v3742
    %v3744 = vsel %vm3598, %v3313, 0.0
    %v3745 = vadd.f32 %v3743, %v3744
    %v3746 = vsel %vm3598, %v3315, 0.0
    %v3747 = vadd.f32 %v3745, %v3746
    %v3748 = vsel %vm3598, %v3317, 0.0
    %v3749 = vadd.f32 %v3747, %v3748
    %v3750 = vsel %vm3598, %v3319, 0.0
    %v3751 = vadd.f32 %v3749, %v3750
    %v3752 = vsel %vm3598, %v3321, 0.0
    %v3753 = vadd.f32 %v3751, %v3752
    %v3754 = vsel %vm3598, %v3323, 0.0
    %v3755 = vadd.f32 %v3753, %v3754
    %v3756 = vsel %vm3598, %v3325, 0.0
    %v3757 = vadd.f32 %v3755, %v3756
    %v3758 = vsel %vm3598, %v3327, 0.0
    %v3759 = vadd.f32 %v3757, %v3758
    %v3760 = vsel %vm3598, %v3329, 0.0
    %v3761 = vadd.f32 %v3759, %v3760
    %v3762 = vsel %vm3598, %v3331, 0.0
    %v3763 = vadd.f32 %v3761, %v3762
    %v3764 = vsel %vm3598, %v3333, 0.0
    %v3765 = vadd.f32 %v3763, %v3764
    %v3766 = vsel %vm3598, %v3335, 0.0
    %v3767 = vadd.f32 %v3765, %v3766
    %v3768 = vsel %vm3598, %v3337, 0.0
    %v3769 = vadd.f32 %v3767, %v3768
    %v3770 = vsel %vm3598, %v3339, 0.0
    %v3771 = vadd.f32 %v3769, %v3770
    %v3772 = vsel %vm3598, %v3341, 0.0
    %v3773 = vadd.f32 %v3771, %v3772
    %v3774 = vsel %vm3598, %v3343, 0.0
    %v3775 = vadd.f32 %v3773, %v3774
    %v3776 = vsel %vm3598, %v3345, 0.0
    %v3777 = vadd.f32 %v3775, %v3776
    %v3778 = vsel %vm3598, %v3347, 0.0
    %v3779 = vadd.f32 %v3777, %v3778
    %v3780 = vsel %vm3598, %v3349, 0.0
    %v3781 = vadd.f32 %v3779, %v3780
    %v3782 = vsel %vm3598, %v3351, 0.0
    %v3783 = vadd.f32 %v3781, %v3782
    %v3784 = vsel %vm3598, %v3353, 0.0
    %v3785 = vadd.f32 %v3783, %v3784
    %v3786 = vsel %vm3598, %v3355, 0.0
    %v3787 = vadd.f32 %v3785, %v3786
    %v3788 = vsel %vm3598, %v3357, 0.0
    %v3789 = vadd.f32 %v3787, %v3788
    %v3790 = vsel %vm3598, %v3359, 0.0
    %v3791 = vadd.f32 %v3789, %v3790
    %v3792 = vsel %vm3598, %v3361, 0.0
    %v3793 = vadd.f32 %v3791, %v3792
    %v3794 = vsel %vm3598, %v3363, 0.0
    %v3795 = vadd.f32 %v3793, %v3794
    %v3796 = vsel %vm3598, %v3365, 0.0
    %v3797 = vadd.f32 %v3795, %v3796
    %v3798 = vsel %vm3598, %v3367, 0.0
    %v3799 = vadd.f32 %v3797, %v3798
    %v3800 = vsel %vm3598, %v3369, 0.0
    %v3801 = vadd.f32 %v3799, %v3800
    %v3802 = vsel %vm3598, %v3371, 0.0
    %v3803 = vadd.f32 %v3801, %v3802
    %v3804 = vsel %vm3598, %v3373, 0.0
    %v3805 = vadd.f32 %v3803, %v3804
    %v3806 = vsel %vm3598, %v3375, 0.0
    %v3807 = vadd.f32 %v3805, %v3806
    %v3808 = vsel %vm3598, %v3377, 0.0
    %v3809 = vadd.f32 %v3807, %v3808
    %v3810 = vsel %vm3598, %v3379, 0.0
    %v3811 = vadd.f32 %v3809, %v3810
    %v3812 = vsel %vm3598, %v3381, 0.0
    %v3813 = vadd.f32 %v3811, %v3812
    %v3814 = vsel %vm3598, %v3383, 0.0
    %v3815 = vadd.f32 %v3813, %v3814
    %v3816 = vsel %vm3598, %v3385, 0.0
    %v3817 = vadd.f32 %v3815, %v3816
    %v3818 = vsel %vm3598, %v3387, 0.0
    %v3819 = vadd.f32 %v3817, %v3818
    %v3820 = vsel %vm3598, %v3389, 0.0
    %v3821 = vadd.f32 %v3819, %v3820
    %v3822 = vsel %vm3598, %v3391, 0.0
    %v3823 = vadd.f32 %v3821, %v3822
    %v3824 = vsel %vm3598, %v3393, 0.0
    %v3825 = vadd.f32 %v3823, %v3824
    %v3826 = vsel %vm3598, %v3395, 0.0
    %v3827 = vadd.f32 %v3825, %v3826
    %v3828 = vsel %vm3598, %v3397, 0.0
    %v3829 = vadd.f32 %v3827, %v3828
    %v3830 = vsel %vm3598, %v3399, 0.0
    %v3831 = vadd.f32 %v3829, %v3830
    %v3832 = vsel %vm3598, %v3401, 0.0
    %v3833 = vadd.f32 %v3831, %v3832
    %v3834 = vsel %vm3598, %v3403, 0.0
    %v3835 = vadd.f32 %v3833, %v3834
    %v3836 = vsel %vm3598, %v3405, 0.0
    %v3837 = vadd.f32 %v3835, %v3836
    %v3838 = vsel %vm3598, %v3407, 0.0
    %v3839 = vadd.f32 %v3837, %v3838
    %v3840 = vsel %vm3598, %v3409, 0.0
    %v3841 = vadd.f32 %v3839, %v3840
    %v3842 = vsel %vm3598, %v3411, 0.0
    %v3843 = vadd.f32 %v3841, %v3842
    %v3844 = vsel %vm3598, %v3413, 0.0
    %v3845 = vadd.f32 %v3843, %v3844
    %v3846 = vsel %vm3598, %v3415, 0.0
    %v3847 = vadd.f32 %v3845, %v3846
    %v3848 = vsel %vm3598, %v3417, 0.0
    %v3849 = vadd.f32 %v3847, %v3848
    %v3850 = vsel %vm3598, %v3419, 0.0
    %v3851 = vadd.f32 %v3849, %v3850
    %v3852 = vsel %vm3598, %v3421, 0.0
    %v3853 = vadd.f32 %v3851, %v3852
    %v3854 = vsel %vm3598, %v3423, 0.0
    %v3855 = vadd.f32 %v3853, %v3854
    %v3856 = vsel %vm3598, %v3425, 0.0
    %v3857 = vadd.f32 %v3855, %v3856
    %v3858 = vsel %vm3598, %v3427, 0.0
    %v3859 = vadd.f32 %v3857, %v3858
    %v3860 = vsel %vm3598, %v3429, 0.0
    %v3861 = vadd.f32 %v3859, %v3860
    %v3862 = vsel %vm3598, %v3431, 0.0
    %v3863 = vadd.f32 %v3861, %v3862
    %v3864 = vsel %vm3598, %v3433, 0.0
    %v3865 = vadd.f32 %v3863, %v3864
    %v3866 = vsel %vm3598, %v3435, 0.0
    %v3867 = vadd.f32 %v3865, %v3866
    %v3868 = vsel %vm3598, %v3437, 0.0
    %v3869 = vadd.f32 %v3867, %v3868
    %v3870 = vsel %vm3598, %v3439, 0.0
    %v3871 = vadd.f32 %v3869, %v3870
    %v3872 = vsel %vm3598, %v3441, 0.0
    %v3873 = vadd.f32 %v3871, %v3872
    %v3874 = vsel %vm3598, %v3443, 0.0
    %v3875 = vadd.f32 %v3873, %v3874
    %v3876 = vsel %vm3598, %v3445, 0.0
    %v3877 = vadd.f32 %v3875, %v3876
    %v3878 = vsel %vm3598, %v3447, 0.0
    %v3879 = vadd.f32 %v3877, %v3878
    %v3880 = vsel %vm3598, %v3449, 0.0
    %v3881 = vadd.f32 %v3879, %v3880
    %v3882 = vsel %vm3598, %v3451, 0.0
    %v3883 = vadd.f32 %v3881, %v3882
    %v3884 = vsel %vm3598, %v3453, 0.0
    %v3885 = vadd.f32 %v3883, %v3884
    %3886 = vadd.xlane.f32.xlu0 %v3885
    %v3887 = vpop.xlane.xlu0 %3886
    %v3888 = vrot.slane %v3887, 4
    %v3889 = vadd.f32 %v3887, %v3888
    %v3890 = vrot.slane %v3889, 2
    %v3891 = vadd.f32 %v3889, %v3890
    %v3892 = vrot.slane %v3891, 1
    %v3893 = vadd.f32 %v3891, %v3892
    %s3894 = vtos %v3893
    %s3895 = smul.f32 %s3894, 5.787037e-05
    %s3896 = sadd.f32 %s2301, %s3895
    %v3897 = vstv %s3896
    %3898 = vst [vmem:[#allocation5] sm:$0xff] %v3897
    // Predicated region
    $region10: #{tpu_custom_call.1} parent=1 // pred_check
      _
    $region11: #{tpu_custom_call.1} parent=1 // pred_check_branch
      %3900 = sbr.rel (0) target = $region13
    $region12: #{tpu_custom_call.1} parent=1 // pred_region
      %s3902 = ssub.s32 128, 128
      %3903 = vsyncadd [#allocation4], %s3902
      %s3905 = sshll.u32 [#allocation5], 4
      %s3906 = int_to_ptr.vmem [resolvable:$true] %s3905
      %3908 = dma.vmem_to_hbm [thread:$0]  %s3906, 128, %s1, [#allocation4]
    $region13: #{tpu_custom_call.1} parent=1 // pred_fallthru
      _
    // Predicated region
    $region14: #{tpu_custom_call.1} parent=1 // pred_check
      _
    $region15: #{tpu_custom_call.1} parent=1 // pred_check_branch
      %3910 = sbr.rel (0) target = $region17
    $region16: #{tpu_custom_call.1} parent=1 // pred_region
      %3911 = dma.done [#allocation4], 128
    $region17: #{tpu_custom_call.1} parent=1 // pred_fallthru
      _
    %3912 = vsyncpa [#allocation3], 1
    %3913 = vsyncpa [#allocation4], 1

</llo_original>
